<compile_context>
chip_gen: v5e
topology: v5e:2x2
jax: 0.10.0
libtpu: 0.0.40
codegen_flags: <defaults>
</compile_context>

<pallas_src>
import jax
import jax.numpy as jnp
from jax.experimental import pallas as pl
from jax.experimental.pallas import tpu as pltpu

LANE = 128  # one gate per 128-lane slot


def encoder_rnn_kernel(tok_ref, embed_ref,
                       wih_all_ref, bias_all_ref,
                       whh_f_ref, bhhn_f_ref, bhhn_b_ref,
                       w_o2p_ref, b_o2p_ref, eps_ref,
                       out_ref):
    S = tok_ref.shape[0]
    G = whh_f_ref.shape[1] // 3            # 128: lane width of one gate slot

    # ---- Embedding: S dynamic row reads from the VMEM table, driven by SMEM token ids.
    # (Out-of-range ids are not range-checked, unlike nn.Embedding.)
    rows = [embed_ref[pl.ds(tok_ref[t], 1), :] for t in range(S)]   # S x (1, H)
    emb = jnp.concatenate(rows, axis=0)                             # (S, H)

    # ---- Fused fwd+bwd input projection for ALL timesteps, hoisted off the serial chain.
    # Lane layout: [fwd r | fwd z | fwd n | bwd r | bwd z | bwd n], each gate in its own
    # 128-lane slot. Bias already folds bih + [bhh_r, bhh_z, 0]; only bhh_n stays in-loop.
    gi_all = (jnp.dot(emb, wih_all_ref[...], preferred_element_type=jnp.float32)
              + bias_all_ref[...])                                  # (S, 6*G)
    gi_f = gi_all[:, :3 * G]                                        # (S, 3*G)
    gi_b = gi_all[S - 1:S, 3 * G:]                                  # (1, 3*G)

    whh_f = whh_f_ref[...]                                          # (G, 3*G), rows H: are 0
    bhhn_f = bhhn_f_ref[...]                                        # (1, G)

    # ---- Forward recurrence, fully unrolled (S is a small static constant). All slices
    # are at lane offsets that are multiples of 128 -> pure VPU/EUP work, no lane shuffles.
    # Padded lanes (H:G) stay exactly 0 through every step.
    h = jnp.zeros((1, G), jnp.float32)
    for t in range(S):
        gi = gi_f[t:t + 1, :]                                       # (1, 3*G)
        gh = jnp.dot(h, whh_f, preferred_element_type=jnp.float32)  # (1, 3*G)
        r = jax.nn.sigmoid(gi[:, :G] + gh[:, :G])
        z = jax.nn.sigmoid(gi[:, G:2 * G] + gh[:, G:2 * G])
        n = jnp.tanh(gi[:, 2 * G:] + r * (gh[:, 2 * G:] + bhhn_f))
        h = (1.0 - z) * n + z * h
    h_fwd = h                                                       # (1, G)

    # ---- Backward direction: output[-1][:, H:] is the backward cell's FIRST step (last
    # token) from h0 = 0, so the h @ Whh_b term vanishes exactly; whh_b is never needed.
    r_b = jax.nn.sigmoid(gi_b[:, :G])
    z_b = jax.nn.sigmoid(gi_b[:, G:2 * G])
    n_b = jnp.tanh(gi_b[:, 2 * G:] + r_b * bhhn_b_ref[...])
    h_bwd = (1.0 - z_b) * n_b                                       # + z_b * h0, h0 == 0

    # ---- Output head: o2p as one (1,G)@(G,2*G) matmul (mu at lanes 0:G, logvar at G:2G),
    # reparameterize, and write a single lane-dense (1, 3*G) row [mu | logvar | z].
    out = h_fwd + h_bwd                                             # (1, G)
    ps = (jnp.dot(out, w_o2p_ref[...], preferred_element_type=jnp.float32)
          + b_o2p_ref[...])                                         # (1, 2*G)
    mu = ps[:, :G]
    logvar = ps[:, G:]
    zz = mu + eps_ref[...] * jnp.exp(logvar * 0.5)
    out_ref[...] = jnp.concatenate([mu, logvar, zz], axis=1)        # (1, 3*G)


def prepare_params(params):
    """One-time parameter prep: gate lane-alignment, fwd/bwd fusion, bias folding.

    Done at parameter-load time so the per-call forward path is a single pallas_call.
    """
    H = params["embed"].shape[1]
    O = params["w_o2p"].shape[1] // 2

    def pad_gates(w):                       # (rows, 3H) -> (rows, 3*LANE), gate g at lane g*LANE
        out = jnp.zeros((w.shape[0], 3 * LANE), jnp.float32)
        for g in range(3):
            out = out.at[:, g * LANE:g * LANE + H].set(w[:, g * H:(g + 1) * H])
        return out

    def pad_rows(w):                        # zero-pad leading dim H -> LANE
        return jnp.zeros((LANE, w.shape[1]), jnp.float32).at[:w.shape[0], :].set(w)

    zeros_n = jnp.zeros((1, H), jnp.float32)
    # Fold bih + [bhh_r, bhh_z, 0] into the hoisted input-projection bias (exact algebra).
    bias_f = params["bih_f"] + jnp.concatenate([params["bhh_f"][:, :2 * H], zeros_n], axis=1)
    bias_b = params["bih_b"] + jnp.concatenate([params["bhh_b"][:, :2 * H], zeros_n], axis=1)

    wih_all = jnp.concatenate([pad_gates(params["wih_f"]), pad_gates(params["wih_b"])], axis=1)
    bias_all = jnp.concatenate([pad_gates(bias_f), pad_gates(bias_b)], axis=1)

    whh_f = pad_rows(pad_gates(params["whh_f"]))                    # (LANE, 3*LANE)
    bhhn_f = jnp.zeros((1, LANE), jnp.float32).at[:, :H].set(params["bhh_f"][:, 2 * H:])
    bhhn_b = jnp.zeros((1, LANE), jnp.float32).at[:, :H].set(params["bhh_b"][:, 2 * H:])

    w_o2p = jnp.zeros((LANE, 2 * LANE), jnp.float32)
    w_o2p = w_o2p.at[:H, :O].set(params["w_o2p"][:, :O])
    w_o2p = w_o2p.at[:H, LANE:LANE + O].set(params["w_o2p"][:, O:])
    b_o2p = jnp.zeros((1, 2 * LANE), jnp.float32)
    b_o2p = b_o2p.at[:, :O].set(params["b_o2p"][:, :O])
    b_o2p = b_o2p.at[:, LANE:LANE + O].set(params["b_o2p"][:, O:])

    return dict(embed=params["embed"].astype(jnp.float32),
                wih_all=wih_all, bias_all=bias_all,
                whh_f=whh_f, bhhn_f=bhhn_f, bhhn_b=bhhn_b,
                w_o2p=w_o2p, b_o2p=b_o2p, output_size=O)


def encoder_rnn_forward(tokens, prep, eps):
    """Single fused Pallas launch: gather + bi-GRU + o2p + reparameterization."""
    O = prep["output_size"]
    # Pad eps (per-call randomness) into the mu lane slot; everything else is pre-padded.
    eps_p = jnp.zeros((1, LANE), jnp.float32).at[:, :O].set(eps)

    smem = pl.BlockSpec(memory_space=pltpu.MemorySpace.SMEM)
    vmem = lambda: pl.BlockSpec(memory_space=pltpu.MemorySpace.VMEM)

    out = pl.pallas_call(
        encoder_rnn_kernel,
        out_shape=jax.ShapeDtypeStruct((1, 3 * LANE), jnp.float32),
        in_specs=[smem] + [vmem() for _ in range(9)],
        out_specs=vmem(),
    )(tokens.astype(jnp.int32), prep["embed"],
      prep["wih_all"], prep["bias_all"],
      prep["whh_f"], prep["bhhn_f"], prep["bhhn_b"],
      prep["w_o2p"], prep["b_o2p"], eps_p)

    mu = out[:, 0:O]
    logvar = out[:, LANE:LANE + O]
    z = out[:, 2 * LANE:2 * LANE + O]
    return mu, logvar, z


def reference_forward(tokens, params, eps):
    """Pure-JAX reference with the full (unsimplified, unpadded) PyTorch GRU equations."""
    emb = jnp.take(params["embed"], tokens, axis=0).astype(jnp.float32)    # (S, H)
    H = emb.shape[1]

    def cell(x, h, wih, whh, bih, bhh):
        gi = x @ wih + bih
        gh = h @ whh + bhh
        r = jax.nn.sigmoid(gi[:, :H] + gh[:, :H])
        z = jax.nn.sigmoid(gi[:, H:2 * H] + gh[:, H:2 * H])
        n = jnp.tanh(gi[:, 2 * H:] + r * gh[:, 2 * H:])
        return (1.0 - z) * n + z * h

    h = jnp.zeros((1, H), jnp.float32)
    for t in range(emb.shape[0]):
        h = cell(emb[t:t + 1], h,
                 params["wih_f"], params["whh_f"], params["bih_f"], params["bhh_f"])
    h_b = cell(emb[-1:], jnp.zeros((1, H), jnp.float32),
               params["wih_b"], params["whh_b"], params["bih_b"], params["bhh_b"])
    out = h + h_b
    ps = out @ params["w_o2p"] + params["b_o2p"]
    O = ps.shape[1] // 2
    mu, logvar = ps[:, :O], ps[:, O:]
    z = mu + eps * jnp.exp(logvar * 0.5)
    return mu, logvar, z


def init_params(key, input_size, hidden_size, output_size):
    """Deterministic synthetic parameters.

    Layout (vs. PyTorch): weight_ih/hh_l0 (3H, H) -> transposed to (H, 3H), gate order
    [r, z, n] along the 3H axis; biases (3H,) -> (1, 3H); o2p weight (2O, H) -> transposed
    to (H, 2O), bias (2O,) -> (1, 2O).
    """
    H, O = hidden_size, output_size
    bound = 1.0 / float(H) ** 0.5
    keys = jax.random.split(key, 13)
    u = lambda kk, shape: jax.random.uniform(kk, shape, jnp.float32, -bound, bound)
    return dict(
        embed=jax.random.normal(keys[0], (input_size, H), jnp.float32),
        wih_f=u(keys[1], (H, 3 * H)), whh_f=u(keys[2], (H, 3 * H)),
        bih_f=u(keys[3], (1, 3 * H)), bhh_f=u(keys[4], (1, 3 * H)),
        wih_b=u(keys[5], (H, 3 * H)), whh_b=u(keys[6], (H, 3 * H)),
        bih_b=u(keys[7], (1, 3 * H)), bhh_b=u(keys[8], (1, 3 * H)),
        w_o2p=u(keys[9], (H, 2 * O)), b_o2p=u(keys[10], (1, 2 * O)),
    )


if __name__ == "__main__":
    input_size, hidden_size, output_size, seq_len = 16, 32, 32, 8

    key = jax.random.PRNGKey(0)
    kp, kt, ke = jax.random.split(key, 3)
    params = init_params(kp, input_size, hidden_size, output_size)
    prep = prepare_params(params)                 # one-time, parameter-load-time prep
    tokens = jax.random.randint(kt, (seq_len,), 0, input_size, dtype=jnp.int32)
    # torch.randn eps for the reparameterization trick, generated host-side.
    eps = jax.random.normal(ke, (1, output_size), jnp.float32)

    mu, logvar, z = encoder_rnn_forward(tokens, prep, eps)
    jax.block_until_ready((mu, logvar, z))

    mu_r, lv_r, z_r = reference_forward(tokens, params, eps)
    assert mu.shape == (1, output_size) and logvar.shape == (1, output_size) and z.shape == (1, output_size)
    assert jnp.allclose(mu, mu_r, atol=1e-4, rtol=1e-4)
    assert jnp.allclose(logvar, lv_r, atol=1e-4, rtol=1e-4)
    assert jnp.allclose(z, z_r, atol=1e-4, rtol=1e-4)

    print("KERNEL_OK")
</pallas_src>

<mosaic_0001>
module attributes {stable_mosaic.version = 11 : i64} {
  func.func @encoder_rnn_kernel(%arg0: memref<8xi32, #tpu.memory_space<smem>>, %arg1: memref<16x32xf32, #tpu.memory_space<vmem>>, %arg2: memref<32x768xf32, #tpu.memory_space<vmem>>, %arg3: memref<1x768xf32, #tpu.memory_space<vmem>>, %arg4: memref<128x384xf32, #tpu.memory_space<vmem>>, %arg5: memref<1x128xf32, #tpu.memory_space<vmem>>, %arg6: memref<1x128xf32, #tpu.memory_space<vmem>>, %arg7: memref<128x256xf32, #tpu.memory_space<vmem>>, %arg8: memref<1x256xf32, #tpu.memory_space<vmem>>, %arg9: memref<1x128xf32, #tpu.memory_space<vmem>>, %arg10: memref<1x384xf32, #tpu.memory_space<vmem>>) attributes {dimension_semantics = [], scalar_prefetch = 0 : i64, scratch_operands = 0 : i64, tpu.core_type = #tpu.core_type<tc>} {
    %c0 = arith.constant 0 : index
    %0 = memref.load %arg0[%c0] : memref<8xi32, #tpu.memory_space<smem>>
    %1 = arith.index_cast %0 : i32 to index
    %c0_0 = arith.constant 0 : index
    %2 = vector.load %arg1[%1, %c0_0] : memref<16x32xf32, #tpu.memory_space<vmem>>, vector<1x32xf32>
    %c1 = arith.constant 1 : index
    %3 = memref.load %arg0[%c1] : memref<8xi32, #tpu.memory_space<smem>>
    %4 = arith.index_cast %3 : i32 to index
    %c0_1 = arith.constant 0 : index
    %5 = vector.load %arg1[%4, %c0_1] : memref<16x32xf32, #tpu.memory_space<vmem>>, vector<1x32xf32>
    %c2 = arith.constant 2 : index
    %6 = memref.load %arg0[%c2] : memref<8xi32, #tpu.memory_space<smem>>
    %7 = arith.index_cast %6 : i32 to index
    %c0_2 = arith.constant 0 : index
    %8 = vector.load %arg1[%7, %c0_2] : memref<16x32xf32, #tpu.memory_space<vmem>>, vector<1x32xf32>
    %c3 = arith.constant 3 : index
    %9 = memref.load %arg0[%c3] : memref<8xi32, #tpu.memory_space<smem>>
    %10 = arith.index_cast %9 : i32 to index
    %c0_3 = arith.constant 0 : index
    %11 = vector.load %arg1[%10, %c0_3] : memref<16x32xf32, #tpu.memory_space<vmem>>, vector<1x32xf32>
    %c4 = arith.constant 4 : index
    %12 = memref.load %arg0[%c4] : memref<8xi32, #tpu.memory_space<smem>>
    %13 = arith.index_cast %12 : i32 to index
    %c0_4 = arith.constant 0 : index
    %14 = vector.load %arg1[%13, %c0_4] : memref<16x32xf32, #tpu.memory_space<vmem>>, vector<1x32xf32>
    %c5 = arith.constant 5 : index
    %15 = memref.load %arg0[%c5] : memref<8xi32, #tpu.memory_space<smem>>
    %16 = arith.index_cast %15 : i32 to index
    %c0_5 = arith.constant 0 : index
    %17 = vector.load %arg1[%16, %c0_5] : memref<16x32xf32, #tpu.memory_space<vmem>>, vector<1x32xf32>
    %c6 = arith.constant 6 : index
    %18 = memref.load %arg0[%c6] : memref<8xi32, #tpu.memory_space<smem>>
    %19 = arith.index_cast %18 : i32 to index
    %c0_6 = arith.constant 0 : index
    %20 = vector.load %arg1[%19, %c0_6] : memref<16x32xf32, #tpu.memory_space<vmem>>, vector<1x32xf32>
    %c7 = arith.constant 7 : index
    %21 = memref.load %arg0[%c7] : memref<8xi32, #tpu.memory_space<smem>>
    %22 = arith.index_cast %21 : i32 to index
    %c0_7 = arith.constant 0 : index
    %23 = vector.load %arg1[%22, %c0_7] : memref<16x32xf32, #tpu.memory_space<vmem>>, vector<1x32xf32>
    %24 = tpu.concatenate %2, %5, %8, %11, %14, %17, %20, %23 in 0 : vector<1x32xf32>, vector<1x32xf32>, vector<1x32xf32>, vector<1x32xf32>, vector<1x32xf32>, vector<1x32xf32>, vector<1x32xf32>, vector<1x32xf32> -> vector<8x32xf32>
    %c0_8 = arith.constant 0 : index
    %c0_9 = arith.constant 0 : index
    %25 = vector.load %arg2[%c0_8, %c0_9] : memref<32x768xf32, #tpu.memory_space<vmem>>, vector<32x768xf32>
    %cst = arith.constant dense<0.000000e+00> : vector<8x768xf32>
    %26 = tpu.matmul %24, %25, %cst {dimension_numbers = #tpu.dot_dimension_numbers<[1], [0], [0], [1], [0, 0, 1, 1], [], []>} : vector<8x32xf32>, vector<32x768xf32>, vector<8x768xf32> -> vector<8x768xf32>
    %c0_10 = arith.constant 0 : index
    %c0_11 = arith.constant 0 : index
    %27 = vector.load %arg3[%c0_10, %c0_11] : memref<1x768xf32, #tpu.memory_space<vmem>>, vector<1x768xf32>
    %28 = vector.broadcast %27 : vector<1x768xf32> to vector<8x768xf32>
    %29 = arith.addf %26, %28 : vector<8x768xf32>
    %30 = vector.extract_strided_slice %29 {offsets = [0, 0], sizes = [8, 384], strides = [1, 1]} : vector<8x768xf32> to vector<8x384xf32>
    %31 = vector.extract_strided_slice %29 {offsets = [7, 384], sizes = [1, 384], strides = [1, 1]} : vector<8x768xf32> to vector<1x384xf32>
    %c0_12 = arith.constant 0 : index
    %c0_13 = arith.constant 0 : index
    %32 = vector.load %arg4[%c0_12, %c0_13] : memref<128x384xf32, #tpu.memory_space<vmem>>, vector<128x384xf32>
    %c0_14 = arith.constant 0 : index
    %c0_15 = arith.constant 0 : index
    %33 = vector.load %arg5[%c0_14, %c0_15] : memref<1x128xf32, #tpu.memory_space<vmem>>, vector<1x128xf32>
    %cst_16 = arith.constant 0.000000e+00 : f32
    %34 = vector.broadcast %cst_16 : f32 to vector<1x128xf32>
    %35 = vector.extract_strided_slice %30 {offsets = [0, 0], sizes = [1, 384], strides = [1, 1]} : vector<8x384xf32> to vector<1x384xf32>
    %cst_17 = arith.constant dense<0.000000e+00> : vector<1x384xf32>
    %36 = tpu.matmul %34, %32, %cst_17 {dimension_numbers = #tpu.dot_dimension_numbers<[1], [0], [0], [1], [0, 0, 1, 1], [], []>} : vector<1x128xf32>, vector<128x384xf32>, vector<1x384xf32> -> vector<1x384xf32>
    %37 = vector.extract_strided_slice %35 {offsets = [0, 0], sizes = [1, 128], strides = [1, 1]} : vector<1x384xf32> to vector<1x128xf32>
    %38 = vector.extract_strided_slice %36 {offsets = [0, 0], sizes = [1, 128], strides = [1, 1]} : vector<1x384xf32> to vector<1x128xf32>
    %39 = arith.addf %37, %38 : vector<1x128xf32>
    %40 = arith.negf %39 : vector<1x128xf32>
    %41 = math.exp %40 : vector<1x128xf32>
    %cst_18 = arith.constant 1.000000e+00 : f32
    %42 = vector.broadcast %cst_18 : f32 to vector<1x128xf32>
    %43 = arith.addf %42, %41 : vector<1x128xf32>
    %44 = arith.divf %42, %43 : vector<1x128xf32>
    %45 = vector.extract_strided_slice %35 {offsets = [0, 128], sizes = [1, 128], strides = [1, 1]} : vector<1x384xf32> to vector<1x128xf32>
    %46 = vector.extract_strided_slice %36 {offsets = [0, 128], sizes = [1, 128], strides = [1, 1]} : vector<1x384xf32> to vector<1x128xf32>
    %47 = arith.addf %45, %46 : vector<1x128xf32>
    %48 = arith.negf %47 : vector<1x128xf32>
    %49 = math.exp %48 : vector<1x128xf32>
    %cst_19 = arith.constant 1.000000e+00 : f32
    %50 = vector.broadcast %cst_19 : f32 to vector<1x128xf32>
    %51 = arith.addf %50, %49 : vector<1x128xf32>
    %52 = arith.divf %50, %51 : vector<1x128xf32>
    %53 = vector.extract_strided_slice %35 {offsets = [0, 256], sizes = [1, 128], strides = [1, 1]} : vector<1x384xf32> to vector<1x128xf32>
    %54 = vector.extract_strided_slice %36 {offsets = [0, 256], sizes = [1, 128], strides = [1, 1]} : vector<1x384xf32> to vector<1x128xf32>
    %55 = arith.addf %54, %33 : vector<1x128xf32>
    %56 = arith.mulf %44, %55 : vector<1x128xf32>
    %57 = arith.addf %53, %56 : vector<1x128xf32>
    %58 = math.tanh %57 : vector<1x128xf32>
    %cst_20 = arith.constant 1.000000e+00 : f32
    %59 = vector.broadcast %cst_20 : f32 to vector<1x128xf32>
    %60 = arith.subf %59, %52 : vector<1x128xf32>
    %61 = arith.mulf %60, %58 : vector<1x128xf32>
    %62 = arith.mulf %52, %34 : vector<1x128xf32>
    %63 = arith.addf %61, %62 : vector<1x128xf32>
    %64 = vector.extract_strided_slice %30 {offsets = [1, 0], sizes = [1, 384], strides = [1, 1]} : vector<8x384xf32> to vector<1x384xf32>
    %cst_21 = arith.constant dense<0.000000e+00> : vector<1x384xf32>
    %65 = tpu.matmul %63, %32, %cst_21 {dimension_numbers = #tpu.dot_dimension_numbers<[1], [0], [0], [1], [0, 0, 1, 1], [], []>} : vector<1x128xf32>, vector<128x384xf32>, vector<1x384xf32> -> vector<1x384xf32>
    %66 = vector.extract_strided_slice %64 {offsets = [0, 0], sizes = [1, 128], strides = [1, 1]} : vector<1x384xf32> to vector<1x128xf32>
    %67 = vector.extract_strided_slice %65 {offsets = [0, 0], sizes = [1, 128], strides = [1, 1]} : vector<1x384xf32> to vector<1x128xf32>
    %68 = arith.addf %66, %67 : vector<1x128xf32>
    %69 = arith.negf %68 : vector<1x128xf32>
    %70 = math.exp %69 : vector<1x128xf32>
    %cst_22 = arith.constant 1.000000e+00 : f32
    %71 = vector.broadcast %cst_22 : f32 to vector<1x128xf32>
    %72 = arith.addf %71, %70 : vector<1x128xf32>
    %73 = arith.divf %71, %72 : vector<1x128xf32>
    %74 = vector.extract_strided_slice %64 {offsets = [0, 128], sizes = [1, 128], strides = [1, 1]} : vector<1x384xf32> to vector<1x128xf32>
    %75 = vector.extract_strided_slice %65 {offsets = [0, 128], sizes = [1, 128], strides = [1, 1]} : vector<1x384xf32> to vector<1x128xf32>
    %76 = arith.addf %74, %75 : vector<1x128xf32>
    %77 = arith.negf %76 : vector<1x128xf32>
    %78 = math.exp %77 : vector<1x128xf32>
    %cst_23 = arith.constant 1.000000e+00 : f32
    %79 = vector.broadcast %cst_23 : f32 to vector<1x128xf32>
    %80 = arith.addf %79, %78 : vector<1x128xf32>
    %81 = arith.divf %79, %80 : vector<1x128xf32>
    %82 = vector.extract_strided_slice %64 {offsets = [0, 256], sizes = [1, 128], strides = [1, 1]} : vector<1x384xf32> to vector<1x128xf32>
    %83 = vector.extract_strided_slice %65 {offsets = [0, 256], sizes = [1, 128], strides = [1, 1]} : vector<1x384xf32> to vector<1x128xf32>
    %84 = arith.addf %83, %33 : vector<1x128xf32>
    %85 = arith.mulf %73, %84 : vector<1x128xf32>
    %86 = arith.addf %82, %85 : vector<1x128xf32>
    %87 = math.tanh %86 : vector<1x128xf32>
    %cst_24 = arith.constant 1.000000e+00 : f32
    %88 = vector.broadcast %cst_24 : f32 to vector<1x128xf32>
    %89 = arith.subf %88, %81 : vector<1x128xf32>
    %90 = arith.mulf %89, %87 : vector<1x128xf32>
    %91 = arith.mulf %81, %63 : vector<1x128xf32>
    %92 = arith.addf %90, %91 : vector<1x128xf32>
    %93 = vector.extract_strided_slice %30 {offsets = [2, 0], sizes = [1, 384], strides = [1, 1]} : vector<8x384xf32> to vector<1x384xf32>
    %cst_25 = arith.constant dense<0.000000e+00> : vector<1x384xf32>
    %94 = tpu.matmul %92, %32, %cst_25 {dimension_numbers = #tpu.dot_dimension_numbers<[1], [0], [0], [1], [0, 0, 1, 1], [], []>} : vector<1x128xf32>, vector<128x384xf32>, vector<1x384xf32> -> vector<1x384xf32>
    %95 = vector.extract_strided_slice %93 {offsets = [0, 0], sizes = [1, 128], strides = [1, 1]} : vector<1x384xf32> to vector<1x128xf32>
    %96 = vector.extract_strided_slice %94 {offsets = [0, 0], sizes = [1, 128], strides = [1, 1]} : vector<1x384xf32> to vector<1x128xf32>
    %97 = arith.addf %95, %96 : vector<1x128xf32>
    %98 = arith.negf %97 : vector<1x128xf32>
    %99 = math.exp %98 : vector<1x128xf32>
    %cst_26 = arith.constant 1.000000e+00 : f32
    %100 = vector.broadcast %cst_26 : f32 to vector<1x128xf32>
    %101 = arith.addf %100, %99 : vector<1x128xf32>
    %102 = arith.divf %100, %101 : vector<1x128xf32>
    %103 = vector.extract_strided_slice %93 {offsets = [0, 128], sizes = [1, 128], strides = [1, 1]} : vector<1x384xf32> to vector<1x128xf32>
    %104 = vector.extract_strided_slice %94 {offsets = [0, 128], sizes = [1, 128], strides = [1, 1]} : vector<1x384xf32> to vector<1x128xf32>
    %105 = arith.addf %103, %104 : vector<1x128xf32>
    %106 = arith.negf %105 : vector<1x128xf32>
    %107 = math.exp %106 : vector<1x128xf32>
    %cst_27 = arith.constant 1.000000e+00 : f32
    %108 = vector.broadcast %cst_27 : f32 to vector<1x128xf32>
    %109 = arith.addf %108, %107 : vector<1x128xf32>
    %110 = arith.divf %108, %109 : vector<1x128xf32>
    %111 = vector.extract_strided_slice %93 {offsets = [0, 256], sizes = [1, 128], strides = [1, 1]} : vector<1x384xf32> to vector<1x128xf32>
    %112 = vector.extract_strided_slice %94 {offsets = [0, 256], sizes = [1, 128], strides = [1, 1]} : vector<1x384xf32> to vector<1x128xf32>
    %113 = arith.addf %112, %33 : vector<1x128xf32>
    %114 = arith.mulf %102, %113 : vector<1x128xf32>
    %115 = arith.addf %111, %114 : vector<1x128xf32>
    %116 = math.tanh %115 : vector<1x128xf32>
    %cst_28 = arith.constant 1.000000e+00 : f32
    %117 = vector.broadcast %cst_28 : f32 to vector<1x128xf32>
    %118 = arith.subf %117, %110 : vector<1x128xf32>
    %119 = arith.mulf %118, %116 : vector<1x128xf32>
    %120 = arith.mulf %110, %92 : vector<1x128xf32>
    %121 = arith.addf %119, %120 : vector<1x128xf32>
    %122 = vector.extract_strided_slice %30 {offsets = [3, 0], sizes = [1, 384], strides = [1, 1]} : vector<8x384xf32> to vector<1x384xf32>
    %cst_29 = arith.constant dense<0.000000e+00> : vector<1x384xf32>
    %123 = tpu.matmul %121, %32, %cst_29 {dimension_numbers = #tpu.dot_dimension_numbers<[1], [0], [0], [1], [0, 0, 1, 1], [], []>} : vector<1x128xf32>, vector<128x384xf32>, vector<1x384xf32> -> vector<1x384xf32>
    %124 = vector.extract_strided_slice %122 {offsets = [0, 0], sizes = [1, 128], strides = [1, 1]} : vector<1x384xf32> to vector<1x128xf32>
    %125 = vector.extract_strided_slice %123 {offsets = [0, 0], sizes = [1, 128], strides = [1, 1]} : vector<1x384xf32> to vector<1x128xf32>
    %126 = arith.addf %124, %125 : vector<1x128xf32>
    %127 = arith.negf %126 : vector<1x128xf32>
    %128 = math.exp %127 : vector<1x128xf32>
    %cst_30 = arith.constant 1.000000e+00 : f32
    %129 = vector.broadcast %cst_30 : f32 to vector<1x128xf32>
    %130 = arith.addf %129, %128 : vector<1x128xf32>
    %131 = arith.divf %129, %130 : vector<1x128xf32>
    %132 = vector.extract_strided_slice %122 {offsets = [0, 128], sizes = [1, 128], strides = [1, 1]} : vector<1x384xf32> to vector<1x128xf32>
    %133 = vector.extract_strided_slice %123 {offsets = [0, 128], sizes = [1, 128], strides = [1, 1]} : vector<1x384xf32> to vector<1x128xf32>
    %134 = arith.addf %132, %133 : vector<1x128xf32>
    %135 = arith.negf %134 : vector<1x128xf32>
    %136 = math.exp %135 : vector<1x128xf32>
    %cst_31 = arith.constant 1.000000e+00 : f32
    %137 = vector.broadcast %cst_31 : f32 to vector<1x128xf32>
    %138 = arith.addf %137, %136 : vector<1x128xf32>
    %139 = arith.divf %137, %138 : vector<1x128xf32>
    %140 = vector.extract_strided_slice %122 {offsets = [0, 256], sizes = [1, 128], strides = [1, 1]} : vector<1x384xf32> to vector<1x128xf32>
    %141 = vector.extract_strided_slice %123 {offsets = [0, 256], sizes = [1, 128], strides = [1, 1]} : vector<1x384xf32> to vector<1x128xf32>
    %142 = arith.addf %141, %33 : vector<1x128xf32>
    %143 = arith.mulf %131, %142 : vector<1x128xf32>
    %144 = arith.addf %140, %143 : vector<1x128xf32>
    %145 = math.tanh %144 : vector<1x128xf32>
    %cst_32 = arith.constant 1.000000e+00 : f32
    %146 = vector.broadcast %cst_32 : f32 to vector<1x128xf32>
    %147 = arith.subf %146, %139 : vector<1x128xf32>
    %148 = arith.mulf %147, %145 : vector<1x128xf32>
    %149 = arith.mulf %139, %121 : vector<1x128xf32>
    %150 = arith.addf %148, %149 : vector<1x128xf32>
    %151 = vector.extract_strided_slice %30 {offsets = [4, 0], sizes = [1, 384], strides = [1, 1]} : vector<8x384xf32> to vector<1x384xf32>
    %cst_33 = arith.constant dense<0.000000e+00> : vector<1x384xf32>
    %152 = tpu.matmul %150, %32, %cst_33 {dimension_numbers = #tpu.dot_dimension_numbers<[1], [0], [0], [1], [0, 0, 1, 1], [], []>} : vector<1x128xf32>, vector<128x384xf32>, vector<1x384xf32> -> vector<1x384xf32>
    %153 = vector.extract_strided_slice %151 {offsets = [0, 0], sizes = [1, 128], strides = [1, 1]} : vector<1x384xf32> to vector<1x128xf32>
    %154 = vector.extract_strided_slice %152 {offsets = [0, 0], sizes = [1, 128], strides = [1, 1]} : vector<1x384xf32> to vector<1x128xf32>
    %155 = arith.addf %153, %154 : vector<1x128xf32>
    %156 = arith.negf %155 : vector<1x128xf32>
    %157 = math.exp %156 : vector<1x128xf32>
    %cst_34 = arith.constant 1.000000e+00 : f32
    %158 = vector.broadcast %cst_34 : f32 to vector<1x128xf32>
    %159 = arith.addf %158, %157 : vector<1x128xf32>
    %160 = arith.divf %158, %159 : vector<1x128xf32>
    %161 = vector.extract_strided_slice %151 {offsets = [0, 128], sizes = [1, 128], strides = [1, 1]} : vector<1x384xf32> to vector<1x128xf32>
    %162 = vector.extract_strided_slice %152 {offsets = [0, 128], sizes = [1, 128], strides = [1, 1]} : vector<1x384xf32> to vector<1x128xf32>
    %163 = arith.addf %161, %162 : vector<1x128xf32>
    %164 = arith.negf %163 : vector<1x128xf32>
    %165 = math.exp %164 : vector<1x128xf32>
    %cst_35 = arith.constant 1.000000e+00 : f32
    %166 = vector.broadcast %cst_35 : f32 to vector<1x128xf32>
    %167 = arith.addf %166, %165 : vector<1x128xf32>
    %168 = arith.divf %166, %167 : vector<1x128xf32>
    %169 = vector.extract_strided_slice %151 {offsets = [0, 256], sizes = [1, 128], strides = [1, 1]} : vector<1x384xf32> to vector<1x128xf32>
    %170 = vector.extract_strided_slice %152 {offsets = [0, 256], sizes = [1, 128], strides = [1, 1]} : vector<1x384xf32> to vector<1x128xf32>
    %171 = arith.addf %170, %33 : vector<1x128xf32>
    %172 = arith.mulf %160, %171 : vector<1x128xf32>
    %173 = arith.addf %169, %172 : vector<1x128xf32>
    %174 = math.tanh %173 : vector<1x128xf32>
    %cst_36 = arith.constant 1.000000e+00 : f32
    %175 = vector.broadcast %cst_36 : f32 to vector<1x128xf32>
    %176 = arith.subf %175, %168 : vector<1x128xf32>
    %177 = arith.mulf %176, %174 : vector<1x128xf32>
    %178 = arith.mulf %168, %150 : vector<1x128xf32>
    %179 = arith.addf %177, %178 : vector<1x128xf32>
    %180 = vector.extract_strided_slice %30 {offsets = [5, 0], sizes = [1, 384], strides = [1, 1]} : vector<8x384xf32> to vector<1x384xf32>
    %cst_37 = arith.constant dense<0.000000e+00> : vector<1x384xf32>
    %181 = tpu.matmul %179, %32, %cst_37 {dimension_numbers = #tpu.dot_dimension_numbers<[1], [0], [0], [1], [0, 0, 1, 1], [], []>} : vector<1x128xf32>, vector<128x384xf32>, vector<1x384xf32> -> vector<1x384xf32>
    %182 = vector.extract_strided_slice %180 {offsets = [0, 0], sizes = [1, 128], strides = [1, 1]} : vector<1x384xf32> to vector<1x128xf32>
    %183 = vector.extract_strided_slice %181 {offsets = [0, 0], sizes = [1, 128], strides = [1, 1]} : vector<1x384xf32> to vector<1x128xf32>
    %184 = arith.addf %182, %183 : vector<1x128xf32>
    %185 = arith.negf %184 : vector<1x128xf32>
    %186 = math.exp %185 : vector<1x128xf32>
    %cst_38 = arith.constant 1.000000e+00 : f32
    %187 = vector.broadcast %cst_38 : f32 to vector<1x128xf32>
    %188 = arith.addf %187, %186 : vector<1x128xf32>
    %189 = arith.divf %187, %188 : vector<1x128xf32>
    %190 = vector.extract_strided_slice %180 {offsets = [0, 128], sizes = [1, 128], strides = [1, 1]} : vector<1x384xf32> to vector<1x128xf32>
    %191 = vector.extract_strided_slice %181 {offsets = [0, 128], sizes = [1, 128], strides = [1, 1]} : vector<1x384xf32> to vector<1x128xf32>
    %192 = arith.addf %190, %191 : vector<1x128xf32>
    %193 = arith.negf %192 : vector<1x128xf32>
    %194 = math.exp %193 : vector<1x128xf32>
    %cst_39 = arith.constant 1.000000e+00 : f32
    %195 = vector.broadcast %cst_39 : f32 to vector<1x128xf32>
    %196 = arith.addf %195, %194 : vector<1x128xf32>
    %197 = arith.divf %195, %196 : vector<1x128xf32>
    %198 = vector.extract_strided_slice %180 {offsets = [0, 256], sizes = [1, 128], strides = [1, 1]} : vector<1x384xf32> to vector<1x128xf32>
    %199 = vector.extract_strided_slice %181 {offsets = [0, 256], sizes = [1, 128], strides = [1, 1]} : vector<1x384xf32> to vector<1x128xf32>
    %200 = arith.addf %199, %33 : vector<1x128xf32>
    %201 = arith.mulf %189, %200 : vector<1x128xf32>
    %202 = arith.addf %198, %201 : vector<1x128xf32>
    %203 = math.tanh %202 : vector<1x128xf32>
    %cst_40 = arith.constant 1.000000e+00 : f32
    %204 = vector.broadcast %cst_40 : f32 to vector<1x128xf32>
    %205 = arith.subf %204, %197 : vector<1x128xf32>
    %206 = arith.mulf %205, %203 : vector<1x128xf32>
    %207 = arith.mulf %197, %179 : vector<1x128xf32>
    %208 = arith.addf %206, %207 : vector<1x128xf32>
    %209 = vector.extract_strided_slice %30 {offsets = [6, 0], sizes = [1, 384], strides = [1, 1]} : vector<8x384xf32> to vector<1x384xf32>
    %cst_41 = arith.constant dense<0.000000e+00> : vector<1x384xf32>
    %210 = tpu.matmul %208, %32, %cst_41 {dimension_numbers = #tpu.dot_dimension_numbers<[1], [0], [0], [1], [0, 0, 1, 1], [], []>} : vector<1x128xf32>, vector<128x384xf32>, vector<1x384xf32> -> vector<1x384xf32>
    %211 = vector.extract_strided_slice %209 {offsets = [0, 0], sizes = [1, 128], strides = [1, 1]} : vector<1x384xf32> to vector<1x128xf32>
    %212 = vector.extract_strided_slice %210 {offsets = [0, 0], sizes = [1, 128], strides = [1, 1]} : vector<1x384xf32> to vector<1x128xf32>
    %213 = arith.addf %211, %212 : vector<1x128xf32>
    %214 = arith.negf %213 : vector<1x128xf32>
    %215 = math.exp %214 : vector<1x128xf32>
    %cst_42 = arith.constant 1.000000e+00 : f32
    %216 = vector.broadcast %cst_42 : f32 to vector<1x128xf32>
    %217 = arith.addf %216, %215 : vector<1x128xf32>
    %218 = arith.divf %216, %217 : vector<1x128xf32>
    %219 = vector.extract_strided_slice %209 {offsets = [0, 128], sizes = [1, 128], strides = [1, 1]} : vector<1x384xf32> to vector<1x128xf32>
    %220 = vector.extract_strided_slice %210 {offsets = [0, 128], sizes = [1, 128], strides = [1, 1]} : vector<1x384xf32> to vector<1x128xf32>
    %221 = arith.addf %219, %220 : vector<1x128xf32>
    %222 = arith.negf %221 : vector<1x128xf32>
    %223 = math.exp %222 : vector<1x128xf32>
    %cst_43 = arith.constant 1.000000e+00 : f32
    %224 = vector.broadcast %cst_43 : f32 to vector<1x128xf32>
    %225 = arith.addf %224, %223 : vector<1x128xf32>
    %226 = arith.divf %224, %225 : vector<1x128xf32>
    %227 = vector.extract_strided_slice %209 {offsets = [0, 256], sizes = [1, 128], strides = [1, 1]} : vector<1x384xf32> to vector<1x128xf32>
    %228 = vector.extract_strided_slice %210 {offsets = [0, 256], sizes = [1, 128], strides = [1, 1]} : vector<1x384xf32> to vector<1x128xf32>
    %229 = arith.addf %228, %33 : vector<1x128xf32>
    %230 = arith.mulf %218, %229 : vector<1x128xf32>
    %231 = arith.addf %227, %230 : vector<1x128xf32>
    %232 = math.tanh %231 : vector<1x128xf32>
    %cst_44 = arith.constant 1.000000e+00 : f32
    %233 = vector.broadcast %cst_44 : f32 to vector<1x128xf32>
    %234 = arith.subf %233, %226 : vector<1x128xf32>
    %235 = arith.mulf %234, %232 : vector<1x128xf32>
    %236 = arith.mulf %226, %208 : vector<1x128xf32>
    %237 = arith.addf %235, %236 : vector<1x128xf32>
    %238 = vector.extract_strided_slice %30 {offsets = [7, 0], sizes = [1, 384], strides = [1, 1]} : vector<8x384xf32> to vector<1x384xf32>
    %cst_45 = arith.constant dense<0.000000e+00> : vector<1x384xf32>
    %239 = tpu.matmul %237, %32, %cst_45 {dimension_numbers = #tpu.dot_dimension_numbers<[1], [0], [0], [1], [0, 0, 1, 1], [], []>} : vector<1x128xf32>, vector<128x384xf32>, vector<1x384xf32> -> vector<1x384xf32>
    %240 = vector.extract_strided_slice %238 {offsets = [0, 0], sizes = [1, 128], strides = [1, 1]} : vector<1x384xf32> to vector<1x128xf32>
    %241 = vector.extract_strided_slice %239 {offsets = [0, 0], sizes = [1, 128], strides = [1, 1]} : vector<1x384xf32> to vector<1x128xf32>
    %242 = arith.addf %240, %241 : vector<1x128xf32>
    %243 = arith.negf %242 : vector<1x128xf32>
    %244 = math.exp %243 : vector<1x128xf32>
    %cst_46 = arith.constant 1.000000e+00 : f32
    %245 = vector.broadcast %cst_46 : f32 to vector<1x128xf32>
    %246 = arith.addf %245, %244 : vector<1x128xf32>
    %247 = arith.divf %245, %246 : vector<1x128xf32>
    %248 = vector.extract_strided_slice %238 {offsets = [0, 128], sizes = [1, 128], strides = [1, 1]} : vector<1x384xf32> to vector<1x128xf32>
    %249 = vector.extract_strided_slice %239 {offsets = [0, 128], sizes = [1, 128], strides = [1, 1]} : vector<1x384xf32> to vector<1x128xf32>
    %250 = arith.addf %248, %249 : vector<1x128xf32>
    %251 = arith.negf %250 : vector<1x128xf32>
    %252 = math.exp %251 : vector<1x128xf32>
    %cst_47 = arith.constant 1.000000e+00 : f32
    %253 = vector.broadcast %cst_47 : f32 to vector<1x128xf32>
    %254 = arith.addf %253, %252 : vector<1x128xf32>
    %255 = arith.divf %253, %254 : vector<1x128xf32>
    %256 = vector.extract_strided_slice %238 {offsets = [0, 256], sizes = [1, 128], strides = [1, 1]} : vector<1x384xf32> to vector<1x128xf32>
    %257 = vector.extract_strided_slice %239 {offsets = [0, 256], sizes = [1, 128], strides = [1, 1]} : vector<1x384xf32> to vector<1x128xf32>
    %258 = arith.addf %257, %33 : vector<1x128xf32>
    %259 = arith.mulf %247, %258 : vector<1x128xf32>
    %260 = arith.addf %256, %259 : vector<1x128xf32>
    %261 = math.tanh %260 : vector<1x128xf32>
    %cst_48 = arith.constant 1.000000e+00 : f32
    %262 = vector.broadcast %cst_48 : f32 to vector<1x128xf32>
    %263 = arith.subf %262, %255 : vector<1x128xf32>
    %264 = arith.mulf %263, %261 : vector<1x128xf32>
    %265 = arith.mulf %255, %237 : vector<1x128xf32>
    %266 = arith.addf %264, %265 : vector<1x128xf32>
    %267 = vector.extract_strided_slice %31 {offsets = [0, 0], sizes = [1, 128], strides = [1, 1]} : vector<1x384xf32> to vector<1x128xf32>
    %268 = arith.negf %267 : vector<1x128xf32>
    %269 = math.exp %268 : vector<1x128xf32>
    %cst_49 = arith.constant 1.000000e+00 : f32
    %270 = vector.broadcast %cst_49 : f32 to vector<1x128xf32>
    %271 = arith.addf %270, %269 : vector<1x128xf32>
    %272 = arith.divf %270, %271 : vector<1x128xf32>
    %273 = vector.extract_strided_slice %31 {offsets = [0, 128], sizes = [1, 128], strides = [1, 1]} : vector<1x384xf32> to vector<1x128xf32>
    %274 = arith.negf %273 : vector<1x128xf32>
    %275 = math.exp %274 : vector<1x128xf32>
    %cst_50 = arith.constant 1.000000e+00 : f32
    %276 = vector.broadcast %cst_50 : f32 to vector<1x128xf32>
    %277 = arith.addf %276, %275 : vector<1x128xf32>
    %278 = arith.divf %276, %277 : vector<1x128xf32>
    %279 = vector.extract_strided_slice %31 {offsets = [0, 256], sizes = [1, 128], strides = [1, 1]} : vector<1x384xf32> to vector<1x128xf32>
    %c0_51 = arith.constant 0 : index
    %c0_52 = arith.constant 0 : index
    %280 = vector.load %arg6[%c0_51, %c0_52] : memref<1x128xf32, #tpu.memory_space<vmem>>, vector<1x128xf32>
    %281 = arith.mulf %272, %280 : vector<1x128xf32>
    %282 = arith.addf %279, %281 : vector<1x128xf32>
    %283 = math.tanh %282 : vector<1x128xf32>
    %cst_53 = arith.constant 1.000000e+00 : f32
    %284 = vector.broadcast %cst_53 : f32 to vector<1x128xf32>
    %285 = arith.subf %284, %278 : vector<1x128xf32>
    %286 = arith.mulf %285, %283 : vector<1x128xf32>
    %287 = arith.addf %266, %286 : vector<1x128xf32>
    %c0_54 = arith.constant 0 : index
    %c0_55 = arith.constant 0 : index
    %288 = vector.load %arg7[%c0_54, %c0_55] : memref<128x256xf32, #tpu.memory_space<vmem>>, vector<128x256xf32>
    %cst_56 = arith.constant dense<0.000000e+00> : vector<1x256xf32>
    %289 = tpu.matmul %287, %288, %cst_56 {dimension_numbers = #tpu.dot_dimension_numbers<[1], [0], [0], [1], [0, 0, 1, 1], [], []>} : vector<1x128xf32>, vector<128x256xf32>, vector<1x256xf32> -> vector<1x256xf32>
    %c0_57 = arith.constant 0 : index
    %c0_58 = arith.constant 0 : index
    %290 = vector.load %arg8[%c0_57, %c0_58] : memref<1x256xf32, #tpu.memory_space<vmem>>, vector<1x256xf32>
    %291 = arith.addf %289, %290 : vector<1x256xf32>
    %292 = vector.extract_strided_slice %291 {offsets = [0, 0], sizes = [1, 128], strides = [1, 1]} : vector<1x256xf32> to vector<1x128xf32>
    %293 = vector.extract_strided_slice %291 {offsets = [0, 128], sizes = [1, 128], strides = [1, 1]} : vector<1x256xf32> to vector<1x128xf32>
    %c0_59 = arith.constant 0 : index
    %c0_60 = arith.constant 0 : index
    %294 = vector.load %arg9[%c0_59, %c0_60] : memref<1x128xf32, #tpu.memory_space<vmem>>, vector<1x128xf32>
    %cst_61 = arith.constant 5.000000e-01 : f32
    %295 = vector.broadcast %cst_61 : f32 to vector<1x128xf32>
    %296 = arith.mulf %293, %295 : vector<1x128xf32>
    %297 = math.exp %296 : vector<1x128xf32>
    %298 = arith.mulf %294, %297 : vector<1x128xf32>
    %299 = arith.addf %292, %298 : vector<1x128xf32>
    %300 = tpu.concatenate %292, %293, %299 in 1 : vector<1x128xf32>, vector<1x128xf32>, vector<1x128xf32> -> vector<1x384xf32>
    %c0_62 = arith.constant 0 : index
    %c0_63 = arith.constant 0 : index
    %301 = vector.load %arg10[%c0_62, %c0_63] : memref<1x384xf32, #tpu.memory_space<vmem>>, vector<1x384xf32>
    tpu.vector_store %arg10[%c0_62, %c0_63], %300 {strides = array<i32>} : memref<1x384xf32, #tpu.memory_space<vmem>>, vector<1x384xf32>,
    return
  }
}

</mosaic_0001>

<llo_original>
// kernel: tpu_custom_call.1
$region0: #{tpu_custom_call.1}
  #allocation0 [shape = 'u32[]', space=smem, size = 0x4, offset = 0x4, fixed_abs, tag = 'smem constant byte address 0x4 - core index']
  #allocation1 [shape = 'u32[72,128]{1,0:T(1,128)}', space=vmem, size = 0x9000, scoped, tag = 'internal scratch']
  %s0 = inlined_call_operand.hbm [shape: s32[8], index: 0, kind: input, shape index: {}]
  %s1 = inlined_call_operand.hbm [shape: f32[16,32], index: 1, kind: input, shape index: {}]
  %s2 = inlined_call_operand.hbm [shape: f32[32,768], index: 2, kind: input, shape index: {}]
  %s3 = inlined_call_operand.hbm [shape: f32[1,768], index: 3, kind: input, shape index: {}]
  %s4 = inlined_call_operand.hbm [shape: f32[128,384], index: 4, kind: input, shape index: {}]
  %s5 = inlined_call_operand.vmem [shape: f32[1,128], index: 5, kind: input, shape index: {}]
  %s6 = inlined_call_operand.vmem [shape: f32[1,128], index: 6, kind: input, shape index: {}]
  %s7 = inlined_call_operand.hbm [shape: f32[128,256], index: 7, kind: input, shape index: {}]
  %s8 = inlined_call_operand.vmem [shape: f32[1,256], index: 8, kind: input, shape index: {}]
  %s9 = inlined_call_operand.vmem [shape: f32[1,128], index: 9, kind: input, shape index: {}]
  %s10 = inlined_call_operand.hbm [shape: f32[1,384], index: 10, kind: output, shape index: {}]
  %s11 = sld [smem:[#allocation0]]
  $region74: #{tpu_custom_call.1} parent=0
    _
  %s13 = ssub.s32 1, %s11
  %s14 = scalar_select 0, %s13, %s11
  $region1: #{tpu_custom_call.1} parent=0
    #allocation2 [shape = 'u8[512]{0}', space=smem, size = 0x200, scoped, tag = 'input window, operand 0, single buffered']
    #allocation3 [shape = 's32[1]{0}', space=sflag, size = 0x4, scoped, tag = 'scoped memory for tpu_custom_call.1']
    #allocation4 [shape = 's32[1]{0}', space=sflag, size = 0x4, scoped, tag = 'scoped memory for tpu_custom_call.1']
    #allocation5 [shape = 's32[1]{0}', space=sflag, size = 0x4, scoped, tag = 'scoped memory for tpu_custom_call.1']
    #allocation6 [shape = 'u8[8192]{0}', space=vmem, size = 0x2000, scoped, tag = 'input window, operand 1, single buffered']
    #allocation7 [shape = 'u8[98304]{0}', space=vmem, size = 0x18000, scoped, tag = 'input window, operand 2, single buffered']
    #allocation8 [shape = 's32[1]{0}', space=sflag, size = 0x4, scoped, tag = 'scoped memory for tpu_custom_call.1']
    #allocation9 [shape = 'u8[3072]{0}', space=vmem, size = 0xc00, scoped, tag = 'input window, operand 3, single buffered']
    #allocation10 [shape = 'u8[196608]{0}', space=vmem, size = 0x30000, scoped, tag = 'input window, operand 4, single buffered']
    #allocation11 [shape = 's32[1]{0}', space=sflag, size = 0x4, scoped, tag = 'scoped memory for tpu_custom_call.1']
    #allocation12 [shape = 'u8[131072]{0}', space=vmem, size = 0x20000, scoped, tag = 'input window, operand 7, single buffered']
    #allocation13 [shape = 'u8[1536]{0}', space=vmem, size = 0x800, scoped, tag = 'output window, operand 0, single buffered']
    %15 = vsyncpa [#allocation5], 0
    %16 = vsyncpa [#allocation3], 0
    %17 = vsyncpa [#allocation8], 0
    %18 = vsyncpa [#allocation11], 0
    %19 = vsyncpa [#allocation4], 0
    // Predicated region
    $region2: #{tpu_custom_call.1} parent=1 // pred_check
      _
    $region3: #{tpu_custom_call.1} parent=1 // pred_check_branch
      %21 = sbr.rel (0) target = $region5
    $region4: #{tpu_custom_call.1} parent=1 // pred_region
      %23 = vsyncadd [#allocation5], 0
      %s25 = sshll.u32 %s0, 4
      %s26 = int_to_ptr.hbm [resolvable:$true] %s25
      %28 = dma.hbm_to_smem %s26, 16, [#allocation2], [#allocation5]
    $region5: #{tpu_custom_call.1} parent=1 // pred_fallthru
      _
    // Predicated region
    $region6: #{tpu_custom_call.1} parent=1 // pred_check
      _
    $region7: #{tpu_custom_call.1} parent=1 // pred_check_branch
      %30 = sbr.rel (0) target = $region9
    $region8: #{tpu_custom_call.1} parent=1 // pred_region
      %32 = vsyncadd [#allocation3], 0
      %s33 = sshll.u32 %s1, 4
      %s34 = int_to_ptr.hbm [resolvable:$true] %s33
      %s35 = sshll.u32 [#allocation6], 4
      %s36 = int_to_ptr.vmem [resolvable:$true] %s35
      %41 = dma.hbm_to_vmem [thread:$0]  %s34, 256, %s36, [#allocation3], 128, 128, 8
    $region9: #{tpu_custom_call.1} parent=1 // pred_fallthru
      _
    // Predicated region
    $region10: #{tpu_custom_call.1} parent=1 // pred_check
      _
    $region11: #{tpu_custom_call.1} parent=1 // pred_check_branch
      %43 = sbr.rel (0) target = $region13
    $region12: #{tpu_custom_call.1} parent=1 // pred_region
      %45 = vsyncadd [#allocation8], 0
      %s46 = sshll.u32 %s2, 4
      %s47 = int_to_ptr.hbm [resolvable:$true] %s46
      %s48 = sshll.u32 [#allocation7], 4
      %s49 = int_to_ptr.vmem [resolvable:$true] %s48
      %54 = dma.hbm_to_vmem [thread:$0]  %s47, 3072, %s49, [#allocation8], 768, 768, 48
    $region13: #{tpu_custom_call.1} parent=1 // pred_fallthru
      _
    // Predicated region
    $region14: #{tpu_custom_call.1} parent=1 // pred_check
      _
    $region15: #{tpu_custom_call.1} parent=1 // pred_check_branch
      %56 = sbr.rel (0) target = $region17
    $region16: #{tpu_custom_call.1} parent=1 // pred_region
      %58 = vsyncadd [#allocation8], 0
      %s60 = sshll.u32 %s3, 4
      %s61 = int_to_ptr.hbm [resolvable:$true] %s60
      %s62 = sshll.u32 [#allocation9], 4
      %s63 = int_to_ptr.vmem [resolvable:$true] %s62
      %65 = dma.hbm_to_vmem [thread:$0]  %s61, 96, %s63, [#allocation8]
    $region17: #{tpu_custom_call.1} parent=1 // pred_fallthru
      _
    // Predicated region
    $region18: #{tpu_custom_call.1} parent=1 // pred_check
      _
    $region19: #{tpu_custom_call.1} parent=1 // pred_check_branch
      %67 = sbr.rel (0) target = $region21
    $region20: #{tpu_custom_call.1} parent=1 // pred_region
      %69 = vsyncadd [#allocation11], 0
      %s70 = sshll.u32 %s4, 4
      %s71 = int_to_ptr.hbm [resolvable:$true] %s70
      %s72 = sshll.u32 [#allocation10], 4
      %s73 = int_to_ptr.vmem [resolvable:$true] %s72
      %78 = dma.hbm_to_vmem [thread:$0]  %s71, 6144, %s73, [#allocation11], 384, 384, 24
    $region21: #{tpu_custom_call.1} parent=1 // pred_fallthru
      _
    // Predicated region
    $region22: #{tpu_custom_call.1} parent=1 // pred_check
      _
    $region23: #{tpu_custom_call.1} parent=1 // pred_check_branch
      %80 = sbr.rel (0) target = $region25
    $region24: #{tpu_custom_call.1} parent=1 // pred_region
      _
    $region25: #{tpu_custom_call.1} parent=1 // pred_fallthru
      _
    // Predicated region
    $region26: #{tpu_custom_call.1} parent=1 // pred_check
      _
    $region27: #{tpu_custom_call.1} parent=1 // pred_check_branch
      %82 = sbr.rel (0) target = $region29
    $region28: #{tpu_custom_call.1} parent=1 // pred_region
      _
    $region29: #{tpu_custom_call.1} parent=1 // pred_fallthru
      _
    // Predicated region
    $region30: #{tpu_custom_call.1} parent=1 // pred_check
      _
    $region31: #{tpu_custom_call.1} parent=1 // pred_check_branch
      %84 = sbr.rel (0) target = $region33
    $region32: #{tpu_custom_call.1} parent=1 // pred_region
      %86 = vsyncadd [#allocation11], 0
      %s87 = sshll.u32 %s7, 4
      %s88 = int_to_ptr.hbm [resolvable:$true] %s87
      %s89 = sshll.u32 [#allocation12], 4
      %s90 = int_to_ptr.vmem [resolvable:$true] %s89
      %95 = dma.hbm_to_vmem [thread:$0]  %s88, 4096, %s90, [#allocation11], 256, 256, 16
    $region33: #{tpu_custom_call.1} parent=1 // pred_fallthru
      _
    // Predicated region
    $region34: #{tpu_custom_call.1} parent=1 // pred_check
      _
    $region35: #{tpu_custom_call.1} parent=1 // pred_check_branch
      %97 = sbr.rel (0) target = $region37
    $region36: #{tpu_custom_call.1} parent=1 // pred_region
      _
    $region37: #{tpu_custom_call.1} parent=1 // pred_fallthru
      _
    // Predicated region
    $region38: #{tpu_custom_call.1} parent=1 // pred_check
      _
    $region39: #{tpu_custom_call.1} parent=1 // pred_check_branch
      %99 = sbr.rel (0) target = $region41
    $region40: #{tpu_custom_call.1} parent=1 // pred_region
      _
    $region41: #{tpu_custom_call.1} parent=1 // pred_fallthru
      _
    // Predicated region
    $region42: #{tpu_custom_call.1} parent=1 // pred_check
      _
    $region43: #{tpu_custom_call.1} parent=1 // pred_check_branch
      %101 = sbr.rel (0) target = $region45
    $region44: #{tpu_custom_call.1} parent=1 // pred_region
      %103 = dma.done [#allocation5], 16
    $region45: #{tpu_custom_call.1} parent=1 // pred_fallthru
      _
    // Predicated region
    $region46: #{tpu_custom_call.1} parent=1 // pred_check
      _
    $region47: #{tpu_custom_call.1} parent=1 // pred_check_branch
      %105 = sbr.rel (0) target = $region49
    $region48: #{tpu_custom_call.1} parent=1 // pred_region
      %107 = dma.done [#allocation3], 256
    $region49: #{tpu_custom_call.1} parent=1 // pred_fallthru
      _
    // Predicated region
    $region50: #{tpu_custom_call.1} parent=1 // pred_check
      _
    $region51: #{tpu_custom_call.1} parent=1 // pred_check_branch
      %109 = sbr.rel (0) target = $region53
    $region52: #{tpu_custom_call.1} parent=1 // pred_region
      %111 = dma.done [#allocation8], 3072
    $region53: #{tpu_custom_call.1} parent=1 // pred_fallthru
      _
    // Predicated region
    $region54: #{tpu_custom_call.1} parent=1 // pred_check
      _
    $region55: #{tpu_custom_call.1} parent=1 // pred_check_branch
      %113 = sbr.rel (0) target = $region57
    $region56: #{tpu_custom_call.1} parent=1 // pred_region
      %115 = dma.done [#allocation8], 96
    $region57: #{tpu_custom_call.1} parent=1 // pred_fallthru
      _
    // Predicated region
    $region58: #{tpu_custom_call.1} parent=1 // pred_check
      _
    $region59: #{tpu_custom_call.1} parent=1 // pred_check_branch
      %117 = sbr.rel (0) target = $region61
    $region60: #{tpu_custom_call.1} parent=1 // pred_region
      %119 = dma.done [#allocation11], 6144
    $region61: #{tpu_custom_call.1} parent=1 // pred_fallthru
      _
    // Predicated region
    $region62: #{tpu_custom_call.1} parent=1 // pred_check
      _
    $region63: #{tpu_custom_call.1} parent=1 // pred_check_branch
      %121 = sbr.rel (0) target = $region65
    $region64: #{tpu_custom_call.1} parent=1 // pred_region
      %123 = dma.done [#allocation11], 4096
    $region65: #{tpu_custom_call.1} parent=1 // pred_fallthru
      _
    %124 = sfence
    %s125 = sld [smem:[#allocation2]]
    %s126 = scalar_lea.vmem [#allocation6], %s125
    %v127 = vld [vmem:[%s126] sm:$0x1]
    %s128 = sld [smem:[#allocation2 + $0x1]]
    %s129 = scalar_lea.vmem [#allocation6], %s128
    %v130 = vld [vmem:[%s129] sm:$0x1]
    %s131 = sld [smem:[#allocation2 + $0x2]]
    %s132 = scalar_lea.vmem [#allocation6], %s131
    %v133 = vld [vmem:[%s132] sm:$0x1]
    %s134 = sld [smem:[#allocation2 + $0x3]]
    %s135 = scalar_lea.vmem [#allocation6], %s134
    %v136 = vld [vmem:[%s135] sm:$0x1]
    %s137 = sld [smem:[#allocation2 + $0x4]]
    %s138 = scalar_lea.vmem [#allocation6], %s137
    %v139 = vld [vmem:[%s138] sm:$0x1]
    %s140 = sld [smem:[#allocation2 + $0x5]]
    %s141 = scalar_lea.vmem [#allocation6], %s140
    %v142 = vld [vmem:[%s141] sm:$0x1]
    %s143 = sld [smem:[#allocation2 + $0x6]]
    %s144 = scalar_lea.vmem [#allocation6], %s143
    %v145 = vld [vmem:[%s144] sm:$0x1]
    %s146 = sld [smem:[#allocation2 + $0x7]]
    %s147 = scalar_lea.vmem [#allocation6], %s146
    %v148 = vld [vmem:[%s147] sm:$0x1]
    %v150 = vrot.slane %v130, 7
    %v153 = vrot.slane %v133, 6
    %v156 = vrot.slane %v136, 5
    %v159 = vrot.slane %v139, 4
    %v162 = vrot.slane %v142, 3
    %v165 = vrot.slane %v145, 2
    %v168 = vrot.slane %v148, 1
    %vm170 = vcmask 1040384
    %v171 = vsel %vm170, %v127, %v150
    %vm172 = vcmask 1041408
    %v173 = vsel %vm172, %v171, %v153
    %vm174 = vcmask 1042432
    %v175 = vsel %vm174, %v173, %v156
    %vm176 = vcmask 1043456
    %v177 = vsel %vm176, %v175, %v159
    %vm178 = vcmask 1044480
    %v179 = vsel %vm178, %v177, %v162
    %vm180 = vcmask 1045504
    %v181 = vsel %vm180, %v179, %v165
    %vm182 = vcmask 1046528
    %v183 = vsel %vm182, %v181, %v168
    %v184 = vld [vmem:[#allocation7] sm:$0xff]
    %v185 = vld [vmem:[#allocation7 + $0x8] sm:$0xff]
    %v186 = vld [vmem:[#allocation7 + $0x10] sm:$0xff]
    %v187 = vld [vmem:[#allocation7 + $0x18] sm:$0xff]
    %v188 = vld [vmem:[#allocation7 + $0x20] sm:$0xff]
    %v189 = vld [vmem:[#allocation7 + $0x28] sm:$0xff]
    %v190 = vld [vmem:[#allocation7 + $0x30] sm:$0xff]
    %v191 = vld [vmem:[#allocation7 + $0x38] sm:$0xff]
    %v192 = vld [vmem:[#allocation7 + $0x40] sm:$0xff]
    %v193 = vld [vmem:[#allocation7 + $0x48] sm:$0xff]
    %v194 = vld [vmem:[#allocation7 + $0x50] sm:$0xff]
    %v195 = vld [vmem:[#allocation7 + $0x58] sm:$0xff]
    %v196 = vld [vmem:[#allocation7 + $0x60] sm:$0xff]
    %v197 = vld [vmem:[#allocation7 + $0x68] sm:$0xff]
    %v198 = vld [vmem:[#allocation7 + $0x70] sm:$0xff]
    %v199 = vld [vmem:[#allocation7 + $0x78] sm:$0xff]
    %v200 = vld [vmem:[#allocation7 + $0x80] sm:$0xff]
    %v201 = vld [vmem:[#allocation7 + $0x88] sm:$0xff]
    %v202 = vld [vmem:[#allocation7 + $0x90] sm:$0xff]
    %v203 = vld [vmem:[#allocation7 + $0x98] sm:$0xff]
    %v204 = vld [vmem:[#allocation7 + $0xa0] sm:$0xff]
    %v205 = vld [vmem:[#allocation7 + $0xa8] sm:$0xff]
    %v206 = vld [vmem:[#allocation7 + $0xb0] sm:$0xff]
    %v207 = vld [vmem:[#allocation7 + $0xb8] sm:$0xff]
    %v208 = vld [vmem:[#allocation9] sm:$0x3f]
    %v210 = vperm.slane %v208, 0
    %v211 = vperm.slane %v208, 1
    %v212 = vperm.slane %v208, 2
    %v213 = vperm.slane %v208, 3
    %v214 = vperm.slane %v208, 4
    %v215 = vperm.slane %v208, 5
    %vm222 = vcmask 261120
    %v224 = vsel %vm222, %v183, 0
    %226 = vmatpush.msra.mxu0 0.0
    %227 = vmatpush.msra.mxu0 0.0
    %228 = vmatpush.msra.mxu0 0.0
    %229 = vmatpush.msra.mxu0 0.0
    %230 = vmatpush.msra.mxu0 0.0
    %231 = vmatpush.msra.mxu0 0.0
    %232 = vmatpush.msra.mxu0 0.0
    %233 = vmatpush.msra.mxu0 0.0
    %234 = vmatpush.msra.mxu0 0.0
    %235 = vmatpush.msra.mxu0 0.0
    %236 = vmatpush.msra.mxu0 0.0
    %237 = vmatpush.msra.mxu0 0.0
    %238 = vmatpush.msra.mxu0 %v202
    %239 = vmatpush.msra.mxu0 %v196
    %240 = vmatpush.msra.mxu0 %v190
    %241 = vmatpush.msra.mxu0 %v184
    %242 = vmatmul.f32.gmra.mxu0 %v224
    %v243 = vpop.f32.mrf.mxu0
    %v244 = vadd.f32 %v210, %v243
    %245 = vdwg.mxu0
    %246 = vmatpush.msra.mxu0 0.0
    %247 = vmatpush.msra.mxu0 0.0
    %248 = vmatpush.msra.mxu0 0.0
    %249 = vmatpush.msra.mxu0 0.0
    %250 = vmatpush.msra.mxu0 0.0
    %251 = vmatpush.msra.mxu0 0.0
    %252 = vmatpush.msra.mxu0 0.0
    %253 = vmatpush.msra.mxu0 0.0
    %254 = vmatpush.msra.mxu0 0.0
    %255 = vmatpush.msra.mxu0 0.0
    %256 = vmatpush.msra.mxu0 0.0
    %257 = vmatpush.msra.mxu0 0.0
    %258 = vmatpush.msra.mxu0 %v203
    %259 = vmatpush.msra.mxu0 %v197
    %260 = vmatpush.msra.mxu0 %v191
    %261 = vmatpush.msra.mxu0 %v185
    %262 = vmatmul.f32.gmra.mxu0 %v224
    %v263 = vpop.f32.mrf.mxu0
    %v264 = vadd.f32 %v211, %v263
    %265 = vdwg.mxu0
    %266 = vmatpush.msra.mxu0 0.0
    %267 = vmatpush.msra.mxu0 0.0
    %268 = vmatpush.msra.mxu0 0.0
    %269 = vmatpush.msra.mxu0 0.0
    %270 = vmatpush.msra.mxu0 0.0
    %271 = vmatpush.msra.mxu0 0.0
    %272 = vmatpush.msra.mxu0 0.0
    %273 = vmatpush.msra.mxu0 0.0
    %274 = vmatpush.msra.mxu0 0.0
    %275 = vmatpush.msra.mxu0 0.0
    %276 = vmatpush.msra.mxu0 0.0
    %277 = vmatpush.msra.mxu0 0.0
    %278 = vmatpush.msra.mxu0 %v204
    %279 = vmatpush.msra.mxu0 %v198
    %280 = vmatpush.msra.mxu0 %v192
    %281 = vmatpush.msra.mxu0 %v186
    %282 = vmatmul.f32.gmra.mxu0 %v224
    %v283 = vpop.f32.mrf.mxu0
    %v284 = vadd.f32 %v212, %v283
    %285 = vdwg.mxu0
    %286 = vmatpush.msra.mxu0 0.0
    %287 = vmatpush.msra.mxu0 0.0
    %288 = vmatpush.msra.mxu0 0.0
    %289 = vmatpush.msra.mxu0 0.0
    %290 = vmatpush.msra.mxu0 0.0
    %291 = vmatpush.msra.mxu0 0.0
    %292 = vmatpush.msra.mxu0 0.0
    %293 = vmatpush.msra.mxu0 0.0
    %294 = vmatpush.msra.mxu0 0.0
    %295 = vmatpush.msra.mxu0 0.0
    %296 = vmatpush.msra.mxu0 0.0
    %297 = vmatpush.msra.mxu0 0.0
    %298 = vmatpush.msra.mxu0 %v205
    %299 = vmatpush.msra.mxu0 %v199
    %300 = vmatpush.msra.mxu0 %v193
    %301 = vmatpush.msra.mxu0 %v187
    %302 = vmatmul.f32.gmra.mxu0 %v224
    %v303 = vpop.f32.mrf.mxu0
    %v304 = vadd.f32 %v213, %v303
    %305 = vdwg.mxu0
    %306 = vmatpush.msra.mxu0 0.0
    %307 = vmatpush.msra.mxu0 0.0
    %308 = vmatpush.msra.mxu0 0.0
    %309 = vmatpush.msra.mxu0 0.0
    %310 = vmatpush.msra.mxu0 0.0
    %311 = vmatpush.msra.mxu0 0.0
    %312 = vmatpush.msra.mxu0 0.0
    %313 = vmatpush.msra.mxu0 0.0
    %314 = vmatpush.msra.mxu0 0.0
    %315 = vmatpush.msra.mxu0 0.0
    %316 = vmatpush.msra.mxu0 0.0
    %317 = vmatpush.msra.mxu0 0.0
    %318 = vmatpush.msra.mxu0 %v206
    %319 = vmatpush.msra.mxu0 %v200
    %320 = vmatpush.msra.mxu0 %v194
    %321 = vmatpush.msra.mxu0 %v188
    %322 = vmatmul.f32.gmra.mxu0 %v224
    %v323 = vpop.f32.mrf.mxu0
    %v324 = vadd.f32 %v214, %v323
    %325 = vdwg.mxu0
    %326 = vmatpush.msra.mxu0 0.0
    %327 = vmatpush.msra.mxu0 0.0
    %328 = vmatpush.msra.mxu0 0.0
    %329 = vmatpush.msra.mxu0 0.0
    %330 = vmatpush.msra.mxu0 0.0
    %331 = vmatpush.msra.mxu0 0.0
    %332 = vmatpush.msra.mxu0 0.0
    %333 = vmatpush.msra.mxu0 0.0
    %334 = vmatpush.msra.mxu0 0.0
    %335 = vmatpush.msra.mxu0 0.0
    %336 = vmatpush.msra.mxu0 0.0
    %337 = vmatpush.msra.mxu0 0.0
    %338 = vmatpush.msra.mxu0 %v207
    %339 = vmatpush.msra.mxu0 %v201
    %340 = vmatpush.msra.mxu0 %v195
    %341 = vmatpush.msra.mxu0 %v189
    %342 = vmatmul.f32.gmra.mxu0 %v224
    %v343 = vpop.f32.mrf.mxu0
    %v344 = vadd.f32 %v215, %v343
    %345 = vdwg.mxu0
    %v346 = vld [vmem:[#allocation10] sm:$0xff]
    %v347 = vld [vmem:[#allocation10 + $0x8] sm:$0xff]
    %v348 = vld [vmem:[#allocation10 + $0x10] sm:$0xff]
    %v349 = vld [vmem:[#allocation10 + $0x18] sm:$0xff]
    %v350 = vld [vmem:[#allocation10 + $0x20] sm:$0xff]
    %v351 = vld [vmem:[#allocation10 + $0x28] sm:$0xff]
    %v352 = vld [vmem:[#allocation10 + $0x30] sm:$0xff]
    %v353 = vld [vmem:[#allocation10 + $0x38] sm:$0xff]
    %v354 = vld [vmem:[#allocation10 + $0x40] sm:$0xff]
    %v355 = vld [vmem:[#allocation10 + $0x48] sm:$0xff]
    %v356 = vld [vmem:[#allocation10 + $0x50] sm:$0xff]
    %v357 = vld [vmem:[#allocation10 + $0x58] sm:$0xff]
    %v358 = vld [vmem:[#allocation10 + $0x60] sm:$0xff]
    %v359 = vld [vmem:[#allocation10 + $0x68] sm:$0xff]
    %v360 = vld [vmem:[#allocation10 + $0x70] sm:$0xff]
    %v361 = vld [vmem:[#allocation10 + $0x78] sm:$0xff]
    %v362 = vld [vmem:[#allocation10 + $0x80] sm:$0xff]
    %v363 = vld [vmem:[#allocation10 + $0x88] sm:$0xff]
    %v364 = vld [vmem:[#allocation10 + $0x90] sm:$0xff]
    %v365 = vld [vmem:[#allocation10 + $0x98] sm:$0xff]
    %v366 = vld [vmem:[#allocation10 + $0xa0] sm:$0xff]
    %v367 = vld [vmem:[#allocation10 + $0xa8] sm:$0xff]
    %v368 = vld [vmem:[#allocation10 + $0xb0] sm:$0xff]
    %v369 = vld [vmem:[#allocation10 + $0xb8] sm:$0xff]
    %v370 = vld [vmem:[#allocation10 + $0xc0] sm:$0xff]
    %v371 = vld [vmem:[#allocation10 + $0xc8] sm:$0xff]
    %v372 = vld [vmem:[#allocation10 + $0xd0] sm:$0xff]
    %v373 = vld [vmem:[#allocation10 + $0xd8] sm:$0xff]
    %v374 = vld [vmem:[#allocation10 + $0xe0] sm:$0xff]
    %v375 = vld [vmem:[#allocation10 + $0xe8] sm:$0xff]
    %v376 = vld [vmem:[#allocation10 + $0xf0] sm:$0xff]
    %v377 = vld [vmem:[#allocation10 + $0xf8] sm:$0xff]
    %v378 = vld [vmem:[#allocation10 + $0x100] sm:$0xff]
    %v379 = vld [vmem:[#allocation10 + $0x108] sm:$0xff]
    %v380 = vld [vmem:[#allocation10 + $0x110] sm:$0xff]
    %v381 = vld [vmem:[#allocation10 + $0x118] sm:$0xff]
    %v382 = vld [vmem:[#allocation10 + $0x120] sm:$0xff]
    %v383 = vld [vmem:[#allocation10 + $0x128] sm:$0xff]
    %v384 = vld [vmem:[#allocation10 + $0x130] sm:$0xff]
    %v385 = vld [vmem:[#allocation10 + $0x138] sm:$0xff]
    %v386 = vld [vmem:[#allocation10 + $0x140] sm:$0xff]
    %v387 = vld [vmem:[#allocation10 + $0x148] sm:$0xff]
    %v388 = vld [vmem:[#allocation10 + $0x150] sm:$0xff]
    %v389 = vld [vmem:[#allocation10 + $0x158] sm:$0xff]
    %v390 = vld [vmem:[#allocation10 + $0x160] sm:$0xff]
    %v391 = vld [vmem:[#allocation10 + $0x168] sm:$0xff]
    %v392 = vld [vmem:[#allocation10 + $0x170] sm:$0xff]
    %v393 = vld [vmem:[#allocation10 + $0x178] sm:$0xff]
    %v394 = vld [vmem:[%s5] sm:$0x1]
    %395 = vmatpush.msra.mxu0 %v391
    %396 = vmatpush.msra.mxu0 %v388
    %397 = vmatpush.msra.mxu0 %v385
    %398 = vmatpush.msra.mxu0 %v382
    %399 = vmatpush.msra.mxu0 %v379
    %400 = vmatpush.msra.mxu0 %v376
    %401 = vmatpush.msra.mxu0 %v373
    %402 = vmatpush.msra.mxu0 %v370
    %403 = vmatpush.msra.mxu0 %v367
    %404 = vmatpush.msra.mxu0 %v364
    %405 = vmatpush.msra.mxu0 %v361
    %406 = vmatpush.msra.mxu0 %v358
    %407 = vmatpush.msra.mxu0 %v355
    %408 = vmatpush.msra.mxu0 %v352
    %409 = vmatpush.msra.mxu0 %v349
    %410 = vmatpush.msra.mxu0 %v346
    %411 = vmatmul.f32.gmra.mxu0 0.0
    %v412 = vpop.f32.mrf.mxu0
    %v413 = vadd.f32 0.0, %v412
    %414 = vdwg.mxu0
    %415 = vmatpush.msra.mxu0 %v392
    %416 = vmatpush.msra.mxu0 %v389
    %417 = vmatpush.msra.mxu0 %v386
    %418 = vmatpush.msra.mxu0 %v383
    %419 = vmatpush.msra.mxu0 %v380
    %420 = vmatpush.msra.mxu0 %v377
    %421 = vmatpush.msra.mxu0 %v374
    %422 = vmatpush.msra.mxu0 %v371
    %423 = vmatpush.msra.mxu0 %v368
    %424 = vmatpush.msra.mxu0 %v365
    %425 = vmatpush.msra.mxu0 %v362
    %426 = vmatpush.msra.mxu0 %v359
    %427 = vmatpush.msra.mxu0 %v356
    %428 = vmatpush.msra.mxu0 %v353
    %429 = vmatpush.msra.mxu0 %v350
    %430 = vmatpush.msra.mxu0 %v347
    %431 = vmatmul.f32.gmra.mxu0 0.0
    %v432 = vpop.f32.mrf.mxu0
    %v433 = vadd.f32 0.0, %v432
    %434 = vdwg.mxu0
    %435 = vmatpush.msra.mxu0 %v393
    %436 = vmatpush.msra.mxu0 %v390
    %437 = vmatpush.msra.mxu0 %v387
    %438 = vmatpush.msra.mxu0 %v384
    %439 = vmatpush.msra.mxu0 %v381
    %440 = vmatpush.msra.mxu0 %v378
    %441 = vmatpush.msra.mxu0 %v375
    %442 = vmatpush.msra.mxu0 %v372
    %443 = vmatpush.msra.mxu0 %v369
    %444 = vmatpush.msra.mxu0 %v366
    %445 = vmatpush.msra.mxu0 %v363
    %446 = vmatpush.msra.mxu0 %v360
    %447 = vmatpush.msra.mxu0 %v357
    %448 = vmatpush.msra.mxu0 %v354
    %449 = vmatpush.msra.mxu0 %v351
    %450 = vmatpush.msra.mxu0 %v348
    %451 = vmatmul.f32.gmra.mxu0 0.0
    %v452 = vpop.f32.mrf.mxu0
    %v453 = vadd.f32 0.0, %v452
    %454 = vdwg.mxu0
    %v455 = vadd.f32 %v244, %v413
    %v456 = vxor.u32 %v455, 2147483648
    %v457 = vmul.f32 %v456, 1.442695
    %v458 = vpow.pop %v457
    %v459 = vadd.f32 %v458, 1.0
    %v460 = vrcp.pop %v459
    %v461 = vmul.f32 %v459, %v460
    %v462 = vsub.f32 1.0, %v461
    %v463 = vmul.f32 %v460, %v462
    %v464 = vadd.f32 %v460, %v463
    %vm465 = vweird.f32 %v459
    %vm466 = vweird.f32 %v460
    %vm467 = vmor %vm465, %vm466
    %v468 = vsel %vm467, %v460, %v464
    %v469 = vand.u32 2147483647, %v459
    %vm470 = vcmp.eq.f32.partialorder %v469, 8.507059e+37
    %v471 = vand.u32 %v459, 2147483648
    %v472 = vor.u32 1.1754944e-38, %v471
    %v473 = vsel %vm470, %v472, %v468
    %v474 = vmul.f32 1.0, %v473
    %v475 = vadd.f32 %v264, %v433
    %v476 = vxor.u32 %v475, 2147483648
    %v477 = vmul.f32 %v476, 1.442695
    %v478 = vpow.pop %v477
    %v479 = vadd.f32 %v478, 1.0
    %v480 = vrcp.pop %v479
    %v481 = vmul.f32 %v479, %v480
    %v482 = vsub.f32 1.0, %v481
    %v483 = vmul.f32 %v480, %v482
    %v484 = vadd.f32 %v480, %v483
    %vm485 = vweird.f32 %v479
    %vm486 = vweird.f32 %v480
    %vm487 = vmor %vm485, %vm486
    %v488 = vsel %vm487, %v480, %v484
    %v489 = vand.u32 2147483647, %v479
    %vm490 = vcmp.eq.f32.partialorder %v489, 8.507059e+37
    %v491 = vand.u32 %v479, 2147483648
    %v492 = vor.u32 1.1754944e-38, %v491
    %v493 = vsel %vm490, %v492, %v488
    %v494 = vmul.f32 1.0, %v493
    %v495 = vadd.f32 %v453, %v394
    %v496 = vmul.f32 %v474, %v495
    %v497 = vadd.f32 %v284, %v496
    %v498 = vtanh.pop %v497
    %v499 = vsub.f32 1.0, %v494
    %v500 = vmul.f32 %v499, %v498
    %v501 = vmul.f32 %v494, 0.0
    %v502 = vadd.f32 %v500, %v501
    %503 = vmatpush.msra.mxu0 %v391
    %504 = vmatpush.msra.mxu0 %v388
    %505 = vmatpush.msra.mxu0 %v385
    %506 = vmatpush.msra.mxu0 %v382
    %507 = vmatpush.msra.mxu0 %v379
    %508 = vmatpush.msra.mxu0 %v376
    %509 = vmatpush.msra.mxu0 %v373
    %510 = vmatpush.msra.mxu0 %v370
    %511 = vmatpush.msra.mxu0 %v367
    %512 = vmatpush.msra.mxu0 %v364
    %513 = vmatpush.msra.mxu0 %v361
    %514 = vmatpush.msra.mxu0 %v358
    %515 = vmatpush.msra.mxu0 %v355
    %516 = vmatpush.msra.mxu0 %v352
    %517 = vmatpush.msra.mxu0 %v349
    %518 = vmatpush.msra.mxu0 %v346
    %519 = vmatmul.f32.gmra.mxu0 %v502
    %v520 = vpop.f32.mrf.mxu0
    %v521 = vadd.f32 0.0, %v520
    %522 = vdwg.mxu0
    %523 = vmatpush.msra.mxu0 %v392
    %524 = vmatpush.msra.mxu0 %v389
    %525 = vmatpush.msra.mxu0 %v386
    %526 = vmatpush.msra.mxu0 %v383
    %527 = vmatpush.msra.mxu0 %v380
    %528 = vmatpush.msra.mxu0 %v377
    %529 = vmatpush.msra.mxu0 %v374
    %530 = vmatpush.msra.mxu0 %v371
    %531 = vmatpush.msra.mxu0 %v368
    %532 = vmatpush.msra.mxu0 %v365
    %533 = vmatpush.msra.mxu0 %v362
    %534 = vmatpush.msra.mxu0 %v359
    %535 = vmatpush.msra.mxu0 %v356
    %536 = vmatpush.msra.mxu0 %v353
    %537 = vmatpush.msra.mxu0 %v350
    %538 = vmatpush.msra.mxu0 %v347
    %539 = vmatmul.f32.gmra.mxu0 %v502
    %v540 = vpop.f32.mrf.mxu0
    %v541 = vadd.f32 0.0, %v540
    %542 = vdwg.mxu0
    %543 = vmatpush.msra.mxu0 %v393
    %544 = vmatpush.msra.mxu0 %v390
    %545 = vmatpush.msra.mxu0 %v387
    %546 = vmatpush.msra.mxu0 %v384
    %547 = vmatpush.msra.mxu0 %v381
    %548 = vmatpush.msra.mxu0 %v378
    %549 = vmatpush.msra.mxu0 %v375
    %550 = vmatpush.msra.mxu0 %v372
    %551 = vmatpush.msra.mxu0 %v369
    %552 = vmatpush.msra.mxu0 %v366
    %553 = vmatpush.msra.mxu0 %v363
    %554 = vmatpush.msra.mxu0 %v360
    %555 = vmatpush.msra.mxu0 %v357
    %556 = vmatpush.msra.mxu0 %v354
    %557 = vmatpush.msra.mxu0 %v351
    %558 = vmatpush.msra.mxu0 %v348
    %559 = vmatmul.f32.gmra.mxu0 %v502
    %v560 = vpop.f32.mrf.mxu0
    %v561 = vadd.f32 0.0, %v560
    %562 = vdwg.mxu0
    %v564 = vrot.slane %v521, 7
    %v566 = vadd.f32 %v244, %v564
    %v567 = vxor.u32 %v566, 2147483648
    %v568 = vmul.f32 %v567, 1.442695
    %v569 = vpow.pop %v568
    %v570 = vadd.f32 %v569, 1.0
    %v571 = vrcp.pop %v570
    %v572 = vmul.f32 %v570, %v571
    %v573 = vsub.f32 1.0, %v572
    %v574 = vmul.f32 %v571, %v573
    %v575 = vadd.f32 %v571, %v574
    %vm576 = vweird.f32 %v570
    %vm577 = vweird.f32 %v571
    %vm578 = vmor %vm576, %vm577
    %v579 = vsel %vm578, %v571, %v575
    %v580 = vand.u32 2147483647, %v570
    %vm581 = vcmp.eq.f32.partialorder %v580, 8.507059e+37
    %v582 = vand.u32 %v570, 2147483648
    %v583 = vor.u32 1.1754944e-38, %v582
    %v584 = vsel %vm581, %v583, %v579
    %v585 = vmul.f32 1.0, %v584
    %v587 = vrot.slane %v541, 7
    %v589 = vadd.f32 %v264, %v587
    %v590 = vxor.u32 %v589, 2147483648
    %v591 = vmul.f32 %v590, 1.442695
    %v592 = vpow.pop %v591
    %v593 = vadd.f32 %v592, 1.0
    %v594 = vrcp.pop %v593
    %v595 = vmul.f32 %v593, %v594
    %v596 = vsub.f32 1.0, %v595
    %v597 = vmul.f32 %v594, %v596
    %v598 = vadd.f32 %v594, %v597
    %vm599 = vweird.f32 %v593
    %vm600 = vweird.f32 %v594
    %vm601 = vmor %vm599, %vm600
    %v602 = vsel %vm601, %v594, %v598
    %v603 = vand.u32 2147483647, %v593
    %vm604 = vcmp.eq.f32.partialorder %v603, 8.507059e+37
    %v605 = vand.u32 %v593, 2147483648
    %v606 = vor.u32 1.1754944e-38, %v605
    %v607 = vsel %vm604, %v606, %v602
    %v608 = vmul.f32 1.0, %v607
    %v609 = vadd.f32 %v561, %v394
    %v611 = vrot.slane %v609, 7
    %v613 = vmul.f32 %v585, %v611
    %v614 = vadd.f32 %v284, %v613
    %v615 = vtanh.pop %v614
    %v616 = vsub.f32 1.0, %v608
    %v617 = vmul.f32 %v616, %v615
    %v619 = vrot.slane %v502, 7
    %v621 = vmul.f32 %v608, %v619
    %v622 = vadd.f32 %v617, %v621
    %v624 = vrot.slane %v622, 1
    %626 = vmatpush.msra.mxu0 %v391
    %627 = vmatpush.msra.mxu0 %v388
    %628 = vmatpush.msra.mxu0 %v385
    %629 = vmatpush.msra.mxu0 %v382
    %630 = vmatpush.msra.mxu0 %v379
    %631 = vmatpush.msra.mxu0 %v376
    %632 = vmatpush.msra.mxu0 %v373
    %633 = vmatpush.msra.mxu0 %v370
    %634 = vmatpush.msra.mxu0 %v367
    %635 = vmatpush.msra.mxu0 %v364
    %636 = vmatpush.msra.mxu0 %v361
    %637 = vmatpush.msra.mxu0 %v358
    %638 = vmatpush.msra.mxu0 %v355
    %639 = vmatpush.msra.mxu0 %v352
    %640 = vmatpush.msra.mxu0 %v349
    %641 = vmatpush.msra.mxu0 %v346
    %642 = vmatmul.f32.gmra.mxu0 %v624
    %v643 = vpop.f32.mrf.mxu0
    %v644 = vadd.f32 0.0, %v643
    %645 = vdwg.mxu0
    %646 = vmatpush.msra.mxu0 %v392
    %647 = vmatpush.msra.mxu0 %v389
    %648 = vmatpush.msra.mxu0 %v386
    %649 = vmatpush.msra.mxu0 %v383
    %650 = vmatpush.msra.mxu0 %v380
    %651 = vmatpush.msra.mxu0 %v377
    %652 = vmatpush.msra.mxu0 %v374
    %653 = vmatpush.msra.mxu0 %v371
    %654 = vmatpush.msra.mxu0 %v368
    %655 = vmatpush.msra.mxu0 %v365
    %656 = vmatpush.msra.mxu0 %v362
    %657 = vmatpush.msra.mxu0 %v359
    %658 = vmatpush.msra.mxu0 %v356
    %659 = vmatpush.msra.mxu0 %v353
    %660 = vmatpush.msra.mxu0 %v350
    %661 = vmatpush.msra.mxu0 %v347
    %662 = vmatmul.f32.gmra.mxu0 %v624
    %v663 = vpop.f32.mrf.mxu0
    %v664 = vadd.f32 0.0, %v663
    %665 = vdwg.mxu0
    %666 = vmatpush.msra.mxu0 %v393
    %667 = vmatpush.msra.mxu0 %v390
    %668 = vmatpush.msra.mxu0 %v387
    %669 = vmatpush.msra.mxu0 %v384
    %670 = vmatpush.msra.mxu0 %v381
    %671 = vmatpush.msra.mxu0 %v378
    %672 = vmatpush.msra.mxu0 %v375
    %673 = vmatpush.msra.mxu0 %v372
    %674 = vmatpush.msra.mxu0 %v369
    %675 = vmatpush.msra.mxu0 %v366
    %676 = vmatpush.msra.mxu0 %v363
    %677 = vmatpush.msra.mxu0 %v360
    %678 = vmatpush.msra.mxu0 %v357
    %679 = vmatpush.msra.mxu0 %v354
    %680 = vmatpush.msra.mxu0 %v351
    %681 = vmatpush.msra.mxu0 %v348
    %682 = vmatmul.f32.gmra.mxu0 %v624
    %v683 = vpop.f32.mrf.mxu0
    %v684 = vadd.f32 0.0, %v683
    %685 = vdwg.mxu0
    %v687 = vrot.slane %v644, 6
    %v689 = vadd.f32 %v244, %v687
    %v690 = vxor.u32 %v689, 2147483648
    %v691 = vmul.f32 %v690, 1.442695
    %v692 = vpow.pop %v691
    %v693 = vadd.f32 %v692, 1.0
    %v694 = vrcp.pop %v693
    %v695 = vmul.f32 %v693, %v694
    %v696 = vsub.f32 1.0, %v695
    %v697 = vmul.f32 %v694, %v696
    %v698 = vadd.f32 %v694, %v697
    %vm699 = vweird.f32 %v693
    %vm700 = vweird.f32 %v694
    %vm701 = vmor %vm699, %vm700
    %v702 = vsel %vm701, %v694, %v698
    %v703 = vand.u32 2147483647, %v693
    %vm704 = vcmp.eq.f32.partialorder %v703, 8.507059e+37
    %v705 = vand.u32 %v693, 2147483648
    %v706 = vor.u32 1.1754944e-38, %v705
    %v707 = vsel %vm704, %v706, %v702
    %v708 = vmul.f32 1.0, %v707
    %v710 = vrot.slane %v664, 6
    %v712 = vadd.f32 %v264, %v710
    %v713 = vxor.u32 %v712, 2147483648
    %v714 = vmul.f32 %v713, 1.442695
    %v715 = vpow.pop %v714
    %v716 = vadd.f32 %v715, 1.0
    %v717 = vrcp.pop %v716
    %v718 = vmul.f32 %v716, %v717
    %v719 = vsub.f32 1.0, %v718
    %v720 = vmul.f32 %v717, %v719
    %v721 = vadd.f32 %v717, %v720
    %vm722 = vweird.f32 %v716
    %vm723 = vweird.f32 %v717
    %vm724 = vmor %vm722, %vm723
    %v725 = vsel %vm724, %v717, %v721
    %v726 = vand.u32 2147483647, %v716
    %vm727 = vcmp.eq.f32.partialorder %v726, 8.507059e+37
    %v728 = vand.u32 %v716, 2147483648
    %v729 = vor.u32 1.1754944e-38, %v728
    %v730 = vsel %vm727, %v729, %v725
    %v731 = vmul.f32 1.0, %v730
    %v732 = vadd.f32 %v684, %v394
    %v734 = vrot.slane %v732, 6
    %v736 = vmul.f32 %v708, %v734
    %v737 = vadd.f32 %v284, %v736
    %v738 = vtanh.pop %v737
    %v739 = vsub.f32 1.0, %v731
    %v740 = vmul.f32 %v739, %v738
    %v741 = vrot.slane %v622, 7
    %v743 = vmul.f32 %v731, %v741
    %v744 = vadd.f32 %v740, %v743
    %v746 = vrot.slane %v744, 2
    %748 = vmatpush.msra.mxu0 %v391
    %749 = vmatpush.msra.mxu0 %v388
    %750 = vmatpush.msra.mxu0 %v385
    %751 = vmatpush.msra.mxu0 %v382
    %752 = vmatpush.msra.mxu0 %v379
    %753 = vmatpush.msra.mxu0 %v376
    %754 = vmatpush.msra.mxu0 %v373
    %755 = vmatpush.msra.mxu0 %v370
    %756 = vmatpush.msra.mxu0 %v367
    %757 = vmatpush.msra.mxu0 %v364
    %758 = vmatpush.msra.mxu0 %v361
    %759 = vmatpush.msra.mxu0 %v358
    %760 = vmatpush.msra.mxu0 %v355
    %761 = vmatpush.msra.mxu0 %v352
    %762 = vmatpush.msra.mxu0 %v349
    %763 = vmatpush.msra.mxu0 %v346
    %764 = vmatmul.f32.gmra.mxu0 %v746
    %v765 = vpop.f32.mrf.mxu0
    %v766 = vadd.f32 0.0, %v765
    %767 = vdwg.mxu0
    %768 = vmatpush.msra.mxu0 %v392
    %769 = vmatpush.msra.mxu0 %v389
    %770 = vmatpush.msra.mxu0 %v386
    %771 = vmatpush.msra.mxu0 %v383
    %772 = vmatpush.msra.mxu0 %v380
    %773 = vmatpush.msra.mxu0 %v377
    %774 = vmatpush.msra.mxu0 %v374
    %775 = vmatpush.msra.mxu0 %v371
    %776 = vmatpush.msra.mxu0 %v368
    %777 = vmatpush.msra.mxu0 %v365
    %778 = vmatpush.msra.mxu0 %v362
    %779 = vmatpush.msra.mxu0 %v359
    %780 = vmatpush.msra.mxu0 %v356
    %781 = vmatpush.msra.mxu0 %v353
    %782 = vmatpush.msra.mxu0 %v350
    %783 = vmatpush.msra.mxu0 %v347
    %784 = vmatmul.f32.gmra.mxu0 %v746
    %v785 = vpop.f32.mrf.mxu0
    %v786 = vadd.f32 0.0, %v785
    %787 = vdwg.mxu0
    %788 = vmatpush.msra.mxu0 %v393
    %789 = vmatpush.msra.mxu0 %v390
    %790 = vmatpush.msra.mxu0 %v387
    %791 = vmatpush.msra.mxu0 %v384
    %792 = vmatpush.msra.mxu0 %v381
    %793 = vmatpush.msra.mxu0 %v378
    %794 = vmatpush.msra.mxu0 %v375
    %795 = vmatpush.msra.mxu0 %v372
    %796 = vmatpush.msra.mxu0 %v369
    %797 = vmatpush.msra.mxu0 %v366
    %798 = vmatpush.msra.mxu0 %v363
    %799 = vmatpush.msra.mxu0 %v360
    %800 = vmatpush.msra.mxu0 %v357
    %801 = vmatpush.msra.mxu0 %v354
    %802 = vmatpush.msra.mxu0 %v351
    %803 = vmatpush.msra.mxu0 %v348
    %804 = vmatmul.f32.gmra.mxu0 %v746
    %v805 = vpop.f32.mrf.mxu0
    %v806 = vadd.f32 0.0, %v805
    %807 = vdwg.mxu0
    %v809 = vrot.slane %v766, 5
    %v811 = vadd.f32 %v244, %v809
    %v812 = vxor.u32 %v811, 2147483648
    %v813 = vmul.f32 %v812, 1.442695
    %v814 = vpow.pop %v813
    %v815 = vadd.f32 %v814, 1.0
    %v816 = vrcp.pop %v815
    %v817 = vmul.f32 %v815, %v816
    %v818 = vsub.f32 1.0, %v817
    %v819 = vmul.f32 %v816, %v818
    %v820 = vadd.f32 %v816, %v819
    %vm821 = vweird.f32 %v815
    %vm822 = vweird.f32 %v816
    %vm823 = vmor %vm821, %vm822
    %v824 = vsel %vm823, %v816, %v820
    %v825 = vand.u32 2147483647, %v815
    %vm826 = vcmp.eq.f32.partialorder %v825, 8.507059e+37
    %v827 = vand.u32 %v815, 2147483648
    %v828 = vor.u32 1.1754944e-38, %v827
    %v829 = vsel %vm826, %v828, %v824
    %v830 = vmul.f32 1.0, %v829
    %v832 = vrot.slane %v786, 5
    %v834 = vadd.f32 %v264, %v832
    %v835 = vxor.u32 %v834, 2147483648
    %v836 = vmul.f32 %v835, 1.442695
    %v837 = vpow.pop %v836
    %v838 = vadd.f32 %v837, 1.0
    %v839 = vrcp.pop %v838
    %v840 = vmul.f32 %v838, %v839
    %v841 = vsub.f32 1.0, %v840
    %v842 = vmul.f32 %v839, %v841
    %v843 = vadd.f32 %v839, %v842
    %vm844 = vweird.f32 %v838
    %vm845 = vweird.f32 %v839
    %vm846 = vmor %vm844, %vm845
    %v847 = vsel %vm846, %v839, %v843
    %v848 = vand.u32 2147483647, %v838
    %vm849 = vcmp.eq.f32.partialorder %v848, 8.507059e+37
    %v850 = vand.u32 %v838, 2147483648
    %v851 = vor.u32 1.1754944e-38, %v850
    %v852 = vsel %vm849, %v851, %v847
    %v853 = vmul.f32 1.0, %v852
    %v854 = vadd.f32 %v806, %v394
    %v856 = vrot.slane %v854, 5
    %v858 = vmul.f32 %v830, %v856
    %v859 = vadd.f32 %v284, %v858
    %v860 = vtanh.pop %v859
    %v861 = vsub.f32 1.0, %v853
    %v862 = vmul.f32 %v861, %v860
    %v863 = vrot.slane %v744, 7
    %v865 = vmul.f32 %v853, %v863
    %v866 = vadd.f32 %v862, %v865
    %v868 = vrot.slane %v866, 3
    %870 = vmatpush.msra.mxu0 %v391
    %871 = vmatpush.msra.mxu0 %v388
    %872 = vmatpush.msra.mxu0 %v385
    %873 = vmatpush.msra.mxu0 %v382
    %874 = vmatpush.msra.mxu0 %v379
    %875 = vmatpush.msra.mxu0 %v376
    %876 = vmatpush.msra.mxu0 %v373
    %877 = vmatpush.msra.mxu0 %v370
    %878 = vmatpush.msra.mxu0 %v367
    %879 = vmatpush.msra.mxu0 %v364
    %880 = vmatpush.msra.mxu0 %v361
    %881 = vmatpush.msra.mxu0 %v358
    %882 = vmatpush.msra.mxu0 %v355
    %883 = vmatpush.msra.mxu0 %v352
    %884 = vmatpush.msra.mxu0 %v349
    %885 = vmatpush.msra.mxu0 %v346
    %886 = vmatmul.f32.gmra.mxu0 %v868
    %v887 = vpop.f32.mrf.mxu0
    %v888 = vadd.f32 0.0, %v887
    %889 = vdwg.mxu0
    %890 = vmatpush.msra.mxu0 %v392
    %891 = vmatpush.msra.mxu0 %v389
    %892 = vmatpush.msra.mxu0 %v386
    %893 = vmatpush.msra.mxu0 %v383
    %894 = vmatpush.msra.mxu0 %v380
    %895 = vmatpush.msra.mxu0 %v377
    %896 = vmatpush.msra.mxu0 %v374
    %897 = vmatpush.msra.mxu0 %v371
    %898 = vmatpush.msra.mxu0 %v368
    %899 = vmatpush.msra.mxu0 %v365
    %900 = vmatpush.msra.mxu0 %v362
    %901 = vmatpush.msra.mxu0 %v359
    %902 = vmatpush.msra.mxu0 %v356
    %903 = vmatpush.msra.mxu0 %v353
    %904 = vmatpush.msra.mxu0 %v350
    %905 = vmatpush.msra.mxu0 %v347
    %906 = vmatmul.f32.gmra.mxu0 %v868
    %v907 = vpop.f32.mrf.mxu0
    %v908 = vadd.f32 0.0, %v907
    %909 = vdwg.mxu0
    %910 = vmatpush.msra.mxu0 %v393
    %911 = vmatpush.msra.mxu0 %v390
    %912 = vmatpush.msra.mxu0 %v387
    %913 = vmatpush.msra.mxu0 %v384
    %914 = vmatpush.msra.mxu0 %v381
    %915 = vmatpush.msra.mxu0 %v378
    %916 = vmatpush.msra.mxu0 %v375
    %917 = vmatpush.msra.mxu0 %v372
    %918 = vmatpush.msra.mxu0 %v369
    %919 = vmatpush.msra.mxu0 %v366
    %920 = vmatpush.msra.mxu0 %v363
    %921 = vmatpush.msra.mxu0 %v360
    %922 = vmatpush.msra.mxu0 %v357
    %923 = vmatpush.msra.mxu0 %v354
    %924 = vmatpush.msra.mxu0 %v351
    %925 = vmatpush.msra.mxu0 %v348
    %926 = vmatmul.f32.gmra.mxu0 %v868
    %v927 = vpop.f32.mrf.mxu0
    %v928 = vadd.f32 0.0, %v927
    %929 = vdwg.mxu0
    %v931 = vrot.slane %v888, 4
    %v933 = vadd.f32 %v244, %v931
    %v934 = vxor.u32 %v933, 2147483648
    %v935 = vmul.f32 %v934, 1.442695
    %v936 = vpow.pop %v935
    %v937 = vadd.f32 %v936, 1.0
    %v938 = vrcp.pop %v937
    %v939 = vmul.f32 %v937, %v938
    %v940 = vsub.f32 1.0, %v939
    %v941 = vmul.f32 %v938, %v940
    %v942 = vadd.f32 %v938, %v941
    %vm943 = vweird.f32 %v937
    %vm944 = vweird.f32 %v938
    %vm945 = vmor %vm943, %vm944
    %v946 = vsel %vm945, %v938, %v942
    %v947 = vand.u32 2147483647, %v937
    %vm948 = vcmp.eq.f32.partialorder %v947, 8.507059e+37
    %v949 = vand.u32 %v937, 2147483648
    %v950 = vor.u32 1.1754944e-38, %v949
    %v951 = vsel %vm948, %v950, %v946
    %v952 = vmul.f32 1.0, %v951
    %v954 = vrot.slane %v908, 4
    %v956 = vadd.f32 %v264, %v954
    %v957 = vxor.u32 %v956, 2147483648
    %v958 = vmul.f32 %v957, 1.442695
    %v959 = vpow.pop %v958
    %v960 = vadd.f32 %v959, 1.0
    %v961 = vrcp.pop %v960
    %v962 = vmul.f32 %v960, %v961
    %v963 = vsub.f32 1.0, %v962
    %v964 = vmul.f32 %v961, %v963
    %v965 = vadd.f32 %v961, %v964
    %vm966 = vweird.f32 %v960
    %vm967 = vweird.f32 %v961
    %vm968 = vmor %vm966, %vm967
    %v969 = vsel %vm968, %v961, %v965
    %v970 = vand.u32 2147483647, %v960
    %vm971 = vcmp.eq.f32.partialorder %v970, 8.507059e+37
    %v972 = vand.u32 %v960, 2147483648
    %v973 = vor.u32 1.1754944e-38, %v972
    %v974 = vsel %vm971, %v973, %v969
    %v975 = vmul.f32 1.0, %v974
    %v976 = vadd.f32 %v928, %v394
    %v978 = vrot.slane %v976, 4
    %v980 = vmul.f32 %v952, %v978
    %v981 = vadd.f32 %v284, %v980
    %v982 = vtanh.pop %v981
    %v983 = vsub.f32 1.0, %v975
    %v984 = vmul.f32 %v983, %v982
    %v985 = vrot.slane %v866, 7
    %v987 = vmul.f32 %v975, %v985
    %v988 = vadd.f32 %v984, %v987
    %v990 = vrot.slane %v988, 4
    %992 = vmatpush.msra.mxu0 %v391
    %993 = vmatpush.msra.mxu0 %v388
    %994 = vmatpush.msra.mxu0 %v385
    %995 = vmatpush.msra.mxu0 %v382
    %996 = vmatpush.msra.mxu0 %v379
    %997 = vmatpush.msra.mxu0 %v376
    %998 = vmatpush.msra.mxu0 %v373
    %999 = vmatpush.msra.mxu0 %v370
    %1000 = vmatpush.msra.mxu0 %v367
    %1001 = vmatpush.msra.mxu0 %v364
    %1002 = vmatpush.msra.mxu0 %v361
    %1003 = vmatpush.msra.mxu0 %v358
    %1004 = vmatpush.msra.mxu0 %v355
    %1005 = vmatpush.msra.mxu0 %v352
    %1006 = vmatpush.msra.mxu0 %v349
    %1007 = vmatpush.msra.mxu0 %v346
    %1008 = vmatmul.f32.gmra.mxu0 %v990
    %v1009 = vpop.f32.mrf.mxu0
    %v1010 = vadd.f32 0.0, %v1009
    %1011 = vdwg.mxu0
    %1012 = vmatpush.msra.mxu0 %v392
    %1013 = vmatpush.msra.mxu0 %v389
    %1014 = vmatpush.msra.mxu0 %v386
    %1015 = vmatpush.msra.mxu0 %v383
    %1016 = vmatpush.msra.mxu0 %v380
    %1017 = vmatpush.msra.mxu0 %v377
    %1018 = vmatpush.msra.mxu0 %v374
    %1019 = vmatpush.msra.mxu0 %v371
    %1020 = vmatpush.msra.mxu0 %v368
    %1021 = vmatpush.msra.mxu0 %v365
    %1022 = vmatpush.msra.mxu0 %v362
    %1023 = vmatpush.msra.mxu0 %v359
    %1024 = vmatpush.msra.mxu0 %v356
    %1025 = vmatpush.msra.mxu0 %v353
    %1026 = vmatpush.msra.mxu0 %v350
    %1027 = vmatpush.msra.mxu0 %v347
    %1028 = vmatmul.f32.gmra.mxu0 %v990
    %v1029 = vpop.f32.mrf.mxu0
    %v1030 = vadd.f32 0.0, %v1029
    %1031 = vdwg.mxu0
    %1032 = vmatpush.msra.mxu0 %v393
    %1033 = vmatpush.msra.mxu0 %v390
    %1034 = vmatpush.msra.mxu0 %v387
    %1035 = vmatpush.msra.mxu0 %v384
    %1036 = vmatpush.msra.mxu0 %v381
    %1037 = vmatpush.msra.mxu0 %v378
    %1038 = vmatpush.msra.mxu0 %v375
    %1039 = vmatpush.msra.mxu0 %v372
    %1040 = vmatpush.msra.mxu0 %v369
    %1041 = vmatpush.msra.mxu0 %v366
    %1042 = vmatpush.msra.mxu0 %v363
    %1043 = vmatpush.msra.mxu0 %v360
    %1044 = vmatpush.msra.mxu0 %v357
    %1045 = vmatpush.msra.mxu0 %v354
    %1046 = vmatpush.msra.mxu0 %v351
    %1047 = vmatpush.msra.mxu0 %v348
    %1048 = vmatmul.f32.gmra.mxu0 %v990
    %v1049 = vpop.f32.mrf.mxu0
    %v1050 = vadd.f32 0.0, %v1049
    %1051 = vdwg.mxu0
    %v1053 = vrot.slane %v1010, 3
    %v1055 = vadd.f32 %v244, %v1053
    %v1056 = vxor.u32 %v1055, 2147483648
    %v1057 = vmul.f32 %v1056, 1.442695
    %v1058 = vpow.pop %v1057
    %v1059 = vadd.f32 %v1058, 1.0
    %v1060 = vrcp.pop %v1059
    %v1061 = vmul.f32 %v1059, %v1060
    %v1062 = vsub.f32 1.0, %v1061
    %v1063 = vmul.f32 %v1060, %v1062
    %v1064 = vadd.f32 %v1060, %v1063
    %vm1065 = vweird.f32 %v1059
    %vm1066 = vweird.f32 %v1060
    %vm1067 = vmor %vm1065, %vm1066
    %v1068 = vsel %vm1067, %v1060, %v1064
    %v1069 = vand.u32 2147483647, %v1059
    %vm1070 = vcmp.eq.f32.partialorder %v1069, 8.507059e+37
    %v1071 = vand.u32 %v1059, 2147483648
    %v1072 = vor.u32 1.1754944e-38, %v1071
    %v1073 = vsel %vm1070, %v1072, %v1068
    %v1074 = vmul.f32 1.0, %v1073
    %v1076 = vrot.slane %v1030, 3
    %v1078 = vadd.f32 %v264, %v1076
    %v1079 = vxor.u32 %v1078, 2147483648
    %v1080 = vmul.f32 %v1079, 1.442695
    %v1081 = vpow.pop %v1080
    %v1082 = vadd.f32 %v1081, 1.0
    %v1083 = vrcp.pop %v1082
    %v1084 = vmul.f32 %v1082, %v1083
    %v1085 = vsub.f32 1.0, %v1084
    %v1086 = vmul.f32 %v1083, %v1085
    %v1087 = vadd.f32 %v1083, %v1086
    %vm1088 = vweird.f32 %v1082
    %vm1089 = vweird.f32 %v1083
    %vm1090 = vmor %vm1088, %vm1089
    %v1091 = vsel %vm1090, %v1083, %v1087
    %v1092 = vand.u32 2147483647, %v1082
    %vm1093 = vcmp.eq.f32.partialorder %v1092, 8.507059e+37
    %v1094 = vand.u32 %v1082, 2147483648
    %v1095 = vor.u32 1.1754944e-38, %v1094
    %v1096 = vsel %vm1093, %v1095, %v1091
    %v1097 = vmul.f32 1.0, %v1096
    %v1098 = vadd.f32 %v1050, %v394
    %v1100 = vrot.slane %v1098, 3
    %v1102 = vmul.f32 %v1074, %v1100
    %v1103 = vadd.f32 %v284, %v1102
    %v1104 = vtanh.pop %v1103
    %v1105 = vsub.f32 1.0, %v1097
    %v1106 = vmul.f32 %v1105, %v1104
    %v1107 = vrot.slane %v988, 7
    %v1109 = vmul.f32 %v1097, %v1107
    %v1110 = vadd.f32 %v1106, %v1109
    %v1112 = vrot.slane %v1110, 5
    %1114 = vmatpush.msra.mxu0 %v391
    %1115 = vmatpush.msra.mxu0 %v388
    %1116 = vmatpush.msra.mxu0 %v385
    %1117 = vmatpush.msra.mxu0 %v382
    %1118 = vmatpush.msra.mxu0 %v379
    %1119 = vmatpush.msra.mxu0 %v376
    %1120 = vmatpush.msra.mxu0 %v373
    %1121 = vmatpush.msra.mxu0 %v370
    %1122 = vmatpush.msra.mxu0 %v367
    %1123 = vmatpush.msra.mxu0 %v364
    %1124 = vmatpush.msra.mxu0 %v361
    %1125 = vmatpush.msra.mxu0 %v358
    %1126 = vmatpush.msra.mxu0 %v355
    %1127 = vmatpush.msra.mxu0 %v352
    %1128 = vmatpush.msra.mxu0 %v349
    %1129 = vmatpush.msra.mxu0 %v346
    %1130 = vmatmul.f32.gmra.mxu0 %v1112
    %v1131 = vpop.f32.mrf.mxu0
    %v1132 = vadd.f32 0.0, %v1131
    %1133 = vdwg.mxu0
    %1134 = vmatpush.msra.mxu0 %v392
    %1135 = vmatpush.msra.mxu0 %v389
    %1136 = vmatpush.msra.mxu0 %v386
    %1137 = vmatpush.msra.mxu0 %v383
    %1138 = vmatpush.msra.mxu0 %v380
    %1139 = vmatpush.msra.mxu0 %v377
    %1140 = vmatpush.msra.mxu0 %v374
    %1141 = vmatpush.msra.mxu0 %v371
    %1142 = vmatpush.msra.mxu0 %v368
    %1143 = vmatpush.msra.mxu0 %v365
    %1144 = vmatpush.msra.mxu0 %v362
    %1145 = vmatpush.msra.mxu0 %v359
    %1146 = vmatpush.msra.mxu0 %v356
    %1147 = vmatpush.msra.mxu0 %v353
    %1148 = vmatpush.msra.mxu0 %v350
    %1149 = vmatpush.msra.mxu0 %v347
    %1150 = vmatmul.f32.gmra.mxu0 %v1112
    %v1151 = vpop.f32.mrf.mxu0
    %v1152 = vadd.f32 0.0, %v1151
    %1153 = vdwg.mxu0
    %1154 = vmatpush.msra.mxu0 %v393
    %1155 = vmatpush.msra.mxu0 %v390
    %1156 = vmatpush.msra.mxu0 %v387
    %1157 = vmatpush.msra.mxu0 %v384
    %1158 = vmatpush.msra.mxu0 %v381
    %1159 = vmatpush.msra.mxu0 %v378
    %1160 = vmatpush.msra.mxu0 %v375
    %1161 = vmatpush.msra.mxu0 %v372
    %1162 = vmatpush.msra.mxu0 %v369
    %1163 = vmatpush.msra.mxu0 %v366
    %1164 = vmatpush.msra.mxu0 %v363
    %1165 = vmatpush.msra.mxu0 %v360
    %1166 = vmatpush.msra.mxu0 %v357
    %1167 = vmatpush.msra.mxu0 %v354
    %1168 = vmatpush.msra.mxu0 %v351
    %1169 = vmatpush.msra.mxu0 %v348
    %1170 = vmatmul.f32.gmra.mxu0 %v1112
    %v1171 = vpop.f32.mrf.mxu0
    %v1172 = vadd.f32 0.0, %v1171
    %1173 = vdwg.mxu0
    %v1175 = vrot.slane %v1132, 2
    %v1177 = vadd.f32 %v244, %v1175
    %v1178 = vxor.u32 %v1177, 2147483648
    %v1179 = vmul.f32 %v1178, 1.442695
    %v1180 = vpow.pop %v1179
    %v1181 = vadd.f32 %v1180, 1.0
    %v1182 = vrcp.pop %v1181
    %v1183 = vmul.f32 %v1181, %v1182
    %v1184 = vsub.f32 1.0, %v1183
    %v1185 = vmul.f32 %v1182, %v1184
    %v1186 = vadd.f32 %v1182, %v1185
    %vm1187 = vweird.f32 %v1181
    %vm1188 = vweird.f32 %v1182
    %vm1189 = vmor %vm1187, %vm1188
    %v1190 = vsel %vm1189, %v1182, %v1186
    %v1191 = vand.u32 2147483647, %v1181
    %vm1192 = vcmp.eq.f32.partialorder %v1191, 8.507059e+37
    %v1193 = vand.u32 %v1181, 2147483648
    %v1194 = vor.u32 1.1754944e-38, %v1193
    %v1195 = vsel %vm1192, %v1194, %v1190
    %v1196 = vmul.f32 1.0, %v1195
    %v1198 = vrot.slane %v1152, 2
    %v1200 = vadd.f32 %v264, %v1198
    %v1201 = vxor.u32 %v1200, 2147483648
    %v1202 = vmul.f32 %v1201, 1.442695
    %v1203 = vpow.pop %v1202
    %v1204 = vadd.f32 %v1203, 1.0
    %v1205 = vrcp.pop %v1204
    %v1206 = vmul.f32 %v1204, %v1205
    %v1207 = vsub.f32 1.0, %v1206
    %v1208 = vmul.f32 %v1205, %v1207
    %v1209 = vadd.f32 %v1205, %v1208
    %vm1210 = vweird.f32 %v1204
    %vm1211 = vweird.f32 %v1205
    %vm1212 = vmor %vm1210, %vm1211
    %v1213 = vsel %vm1212, %v1205, %v1209
    %v1214 = vand.u32 2147483647, %v1204
    %vm1215 = vcmp.eq.f32.partialorder %v1214, 8.507059e+37
    %v1216 = vand.u32 %v1204, 2147483648
    %v1217 = vor.u32 1.1754944e-38, %v1216
    %v1218 = vsel %vm1215, %v1217, %v1213
    %v1219 = vmul.f32 1.0, %v1218
    %v1220 = vadd.f32 %v1172, %v394
    %v1222 = vrot.slane %v1220, 2
    %v1224 = vmul.f32 %v1196, %v1222
    %v1225 = vadd.f32 %v284, %v1224
    %v1226 = vtanh.pop %v1225
    %v1227 = vsub.f32 1.0, %v1219
    %v1228 = vmul.f32 %v1227, %v1226
    %v1229 = vrot.slane %v1110, 7
    %v1231 = vmul.f32 %v1219, %v1229
    %v1232 = vadd.f32 %v1228, %v1231
    %v1234 = vrot.slane %v1232, 6
    %1236 = vmatpush.msra.mxu0 %v391
    %1237 = vmatpush.msra.mxu0 %v388
    %1238 = vmatpush.msra.mxu0 %v385
    %1239 = vmatpush.msra.mxu0 %v382
    %1240 = vmatpush.msra.mxu0 %v379
    %1241 = vmatpush.msra.mxu0 %v376
    %1242 = vmatpush.msra.mxu0 %v373
    %1243 = vmatpush.msra.mxu0 %v370
    %1244 = vmatpush.msra.mxu0 %v367
    %1245 = vmatpush.msra.mxu0 %v364
    %1246 = vmatpush.msra.mxu0 %v361
    %1247 = vmatpush.msra.mxu0 %v358
    %1248 = vmatpush.msra.mxu0 %v355
    %1249 = vmatpush.msra.mxu0 %v352
    %1250 = vmatpush.msra.mxu0 %v349
    %1251 = vmatpush.msra.mxu0 %v346
    %1252 = vmatmul.f32.gmra.mxu0 %v1234
    %v1253 = vpop.f32.mrf.mxu0
    %v1254 = vadd.f32 0.0, %v1253
    %1255 = vdwg.mxu0
    %1256 = vmatpush.msra.mxu0 %v392
    %1257 = vmatpush.msra.mxu0 %v389
    %1258 = vmatpush.msra.mxu0 %v386
    %1259 = vmatpush.msra.mxu0 %v383
    %1260 = vmatpush.msra.mxu0 %v380
    %1261 = vmatpush.msra.mxu0 %v377
    %1262 = vmatpush.msra.mxu0 %v374
    %1263 = vmatpush.msra.mxu0 %v371
    %1264 = vmatpush.msra.mxu0 %v368
    %1265 = vmatpush.msra.mxu0 %v365
    %1266 = vmatpush.msra.mxu0 %v362
    %1267 = vmatpush.msra.mxu0 %v359
    %1268 = vmatpush.msra.mxu0 %v356
    %1269 = vmatpush.msra.mxu0 %v353
    %1270 = vmatpush.msra.mxu0 %v350
    %1271 = vmatpush.msra.mxu0 %v347
    %1272 = vmatmul.f32.gmra.mxu0 %v1234
    %v1273 = vpop.f32.mrf.mxu0
    %v1274 = vadd.f32 0.0, %v1273
    %1275 = vdwg.mxu0
    %1276 = vmatpush.msra.mxu0 %v393
    %1277 = vmatpush.msra.mxu0 %v390
    %1278 = vmatpush.msra.mxu0 %v387
    %1279 = vmatpush.msra.mxu0 %v384
    %1280 = vmatpush.msra.mxu0 %v381
    %1281 = vmatpush.msra.mxu0 %v378
    %1282 = vmatpush.msra.mxu0 %v375
    %1283 = vmatpush.msra.mxu0 %v372
    %1284 = vmatpush.msra.mxu0 %v369
    %1285 = vmatpush.msra.mxu0 %v366
    %1286 = vmatpush.msra.mxu0 %v363
    %1287 = vmatpush.msra.mxu0 %v360
    %1288 = vmatpush.msra.mxu0 %v357
    %1289 = vmatpush.msra.mxu0 %v354
    %1290 = vmatpush.msra.mxu0 %v351
    %1291 = vmatpush.msra.mxu0 %v348
    %1292 = vmatmul.f32.gmra.mxu0 %v1234
    %v1293 = vpop.f32.mrf.mxu0
    %v1294 = vadd.f32 0.0, %v1293
    %1295 = vdwg.mxu0
    %v1297 = vrot.slane %v1254, 1
    %v1299 = vadd.f32 %v244, %v1297
    %v1300 = vxor.u32 %v1299, 2147483648
    %v1301 = vmul.f32 %v1300, 1.442695
    %v1302 = vpow.pop %v1301
    %v1303 = vadd.f32 %v1302, 1.0
    %v1304 = vrcp.pop %v1303
    %v1305 = vmul.f32 %v1303, %v1304
    %v1306 = vsub.f32 1.0, %v1305
    %v1307 = vmul.f32 %v1304, %v1306
    %v1308 = vadd.f32 %v1304, %v1307
    %vm1309 = vweird.f32 %v1303
    %vm1310 = vweird.f32 %v1304
    %vm1311 = vmor %vm1309, %vm1310
    %v1312 = vsel %vm1311, %v1304, %v1308
    %v1313 = vand.u32 2147483647, %v1303
    %vm1314 = vcmp.eq.f32.partialorder %v1313, 8.507059e+37
    %v1315 = vand.u32 %v1303, 2147483648
    %v1316 = vor.u32 1.1754944e-38, %v1315
    %v1317 = vsel %vm1314, %v1316, %v1312
    %v1318 = vmul.f32 1.0, %v1317
    %v1320 = vrot.slane %v1274, 1
    %v1322 = vadd.f32 %v264, %v1320
    %v1323 = vxor.u32 %v1322, 2147483648
    %v1324 = vmul.f32 %v1323, 1.442695
    %v1325 = vpow.pop %v1324
    %v1326 = vadd.f32 %v1325, 1.0
    %v1327 = vrcp.pop %v1326
    %v1328 = vmul.f32 %v1326, %v1327
    %v1329 = vsub.f32 1.0, %v1328
    %v1330 = vmul.f32 %v1327, %v1329
    %v1331 = vadd.f32 %v1327, %v1330
    %vm1332 = vweird.f32 %v1326
    %vm1333 = vweird.f32 %v1327
    %vm1334 = vmor %vm1332, %vm1333
    %v1335 = vsel %vm1334, %v1327, %v1331
    %v1336 = vand.u32 2147483647, %v1326
    %vm1337 = vcmp.eq.f32.partialorder %v1336, 8.507059e+37
    %v1338 = vand.u32 %v1326, 2147483648
    %v1339 = vor.u32 1.1754944e-38, %v1338
    %v1340 = vsel %vm1337, %v1339, %v1335
    %v1341 = vmul.f32 1.0, %v1340
    %v1342 = vadd.f32 %v1294, %v394
    %v1344 = vrot.slane %v1342, 1
    %v1346 = vmul.f32 %v1318, %v1344
    %v1347 = vadd.f32 %v284, %v1346
    %v1348 = vtanh.pop %v1347
    %v1349 = vsub.f32 1.0, %v1341
    %v1350 = vmul.f32 %v1349, %v1348
    %v1351 = vrot.slane %v1232, 7
    %v1353 = vmul.f32 %v1341, %v1351
    %v1354 = vadd.f32 %v1350, %v1353
    %v1355 = vxor.u32 %v304, 2147483648
    %v1356 = vmul.f32 %v1355, 1.442695
    %v1357 = vpow.pop %v1356
    %v1358 = vadd.f32 %v1357, 1.0
    %v1359 = vrcp.pop %v1358
    %v1360 = vmul.f32 %v1358, %v1359
    %v1361 = vsub.f32 1.0, %v1360
    %v1362 = vmul.f32 %v1359, %v1361
    %v1363 = vadd.f32 %v1359, %v1362
    %vm1364 = vweird.f32 %v1358
    %vm1365 = vweird.f32 %v1359
    %vm1366 = vmor %vm1364, %vm1365
    %v1367 = vsel %vm1366, %v1359, %v1363
    %v1368 = vand.u32 2147483647, %v1358
    %vm1369 = vcmp.eq.f32.partialorder %v1368, 8.507059e+37
    %v1370 = vand.u32 %v1358, 2147483648
    %v1371 = vor.u32 1.1754944e-38, %v1370
    %v1372 = vsel %vm1369, %v1371, %v1367
    %v1373 = vmul.f32 1.0, %v1372
    %v1374 = vxor.u32 %v324, 2147483648
    %v1375 = vmul.f32 %v1374, 1.442695
    %v1376 = vpow.pop %v1375
    %v1377 = vadd.f32 %v1376, 1.0
    %v1378 = vrcp.pop %v1377
    %v1379 = vmul.f32 %v1377, %v1378
    %v1380 = vsub.f32 1.0, %v1379
    %v1381 = vmul.f32 %v1378, %v1380
    %v1382 = vadd.f32 %v1378, %v1381
    %vm1383 = vweird.f32 %v1377
    %vm1384 = vweird.f32 %v1378
    %vm1385 = vmor %vm1383, %vm1384
    %v1386 = vsel %vm1385, %v1378, %v1382
    %v1387 = vand.u32 2147483647, %v1377
    %vm1388 = vcmp.eq.f32.partialorder %v1387, 8.507059e+37
    %v1389 = vand.u32 %v1377, 2147483648
    %v1390 = vor.u32 1.1754944e-38, %v1389
    %v1391 = vsel %vm1388, %v1390, %v1386
    %v1392 = vmul.f32 1.0, %v1391
    %v1393 = vld [vmem:[%s6] sm:$0x1]
    %v1395 = vperm.slane %v1393, 0
    %v1397 = vmul.f32 %v1373, %v1395
    %v1398 = vadd.f32 %v344, %v1397
    %v1399 = vtanh.pop %v1398
    %v1400 = vsub.f32 1.0, %v1392
    %v1401 = vmul.f32 %v1400, %v1399
    %v1402 = vadd.f32 %v1354, %v1401
    %v1403 = vld [vmem:[#allocation12] sm:$0xff]
    %v1404 = vld [vmem:[#allocation12 + $0x8] sm:$0xff]
    %v1405 = vld [vmem:[#allocation12 + $0x10] sm:$0xff]
    %v1406 = vld [vmem:[#allocation12 + $0x18] sm:$0xff]
    %v1407 = vld [vmem:[#allocation12 + $0x20] sm:$0xff]
    %v1408 = vld [vmem:[#allocation12 + $0x28] sm:$0xff]
    %v1409 = vld [vmem:[#allocation12 + $0x30] sm:$0xff]
    %v1410 = vld [vmem:[#allocation12 + $0x38] sm:$0xff]
    %v1411 = vld [vmem:[#allocation12 + $0x40] sm:$0xff]
    %v1412 = vld [vmem:[#allocation12 + $0x48] sm:$0xff]
    %v1413 = vld [vmem:[#allocation12 + $0x50] sm:$0xff]
    %v1414 = vld [vmem:[#allocation12 + $0x58] sm:$0xff]
    %v1415 = vld [vmem:[#allocation12 + $0x60] sm:$0xff]
    %v1416 = vld [vmem:[#allocation12 + $0x68] sm:$0xff]
    %v1417 = vld [vmem:[#allocation12 + $0x70] sm:$0xff]
    %v1418 = vld [vmem:[#allocation12 + $0x78] sm:$0xff]
    %v1419 = vld [vmem:[#allocation12 + $0x80] sm:$0xff]
    %v1420 = vld [vmem:[#allocation12 + $0x88] sm:$0xff]
    %v1421 = vld [vmem:[#allocation12 + $0x90] sm:$0xff]
    %v1422 = vld [vmem:[#allocation12 + $0x98] sm:$0xff]
    %v1423 = vld [vmem:[#allocation12 + $0xa0] sm:$0xff]
    %v1424 = vld [vmem:[#allocation12 + $0xa8] sm:$0xff]
    %v1425 = vld [vmem:[#allocation12 + $0xb0] sm:$0xff]
    %v1426 = vld [vmem:[#allocation12 + $0xb8] sm:$0xff]
    %v1427 = vld [vmem:[#allocation12 + $0xc0] sm:$0xff]
    %v1428 = vld [vmem:[#allocation12 + $0xc8] sm:$0xff]
    %v1429 = vld [vmem:[#allocation12 + $0xd0] sm:$0xff]
    %v1430 = vld [vmem:[#allocation12 + $0xd8] sm:$0xff]
    %v1431 = vld [vmem:[#allocation12 + $0xe0] sm:$0xff]
    %v1432 = vld [vmem:[#allocation12 + $0xe8] sm:$0xff]
    %v1433 = vld [vmem:[#allocation12 + $0xf0] sm:$0xff]
    %v1434 = vld [vmem:[#allocation12 + $0xf8] sm:$0xff]
    %v1435 = vld [vmem:[%s8] sm:$0x3]
    %v1437 = vrot.slane %v1402, 7
    %v1440 = vperm.slane %v1435, 0
    %v1441 = vperm.slane %v1435, 1
    %1444 = vmatpush.msra.mxu0 %v1433
    %1445 = vmatpush.msra.mxu0 %v1431
    %1446 = vmatpush.msra.mxu0 %v1429
    %1447 = vmatpush.msra.mxu0 %v1427
    %1448 = vmatpush.msra.mxu0 %v1425
    %1449 = vmatpush.msra.mxu0 %v1423
    %1450 = vmatpush.msra.mxu0 %v1421
    %1451 = vmatpush.msra.mxu0 %v1419
    %1452 = vmatpush.msra.mxu0 %v1417
    %1453 = vmatpush.msra.mxu0 %v1415
    %1454 = vmatpush.msra.mxu0 %v1413
    %1455 = vmatpush.msra.mxu0 %v1411
    %1456 = vmatpush.msra.mxu0 %v1409
    %1457 = vmatpush.msra.mxu0 %v1407
    %1458 = vmatpush.msra.mxu0 %v1405
    %1459 = vmatpush.msra.mxu0 %v1403
    %1460 = vmatmul.f32.gmra.mxu0 %v1437
    %v1461 = vpop.f32.mrf.mxu0
    %v1462 = vadd.f32 %v1440, %v1461
    %1463 = vdwg.mxu0
    %1464 = vmatpush.msra.mxu0 %v1434
    %1465 = vmatpush.msra.mxu0 %v1432
    %1466 = vmatpush.msra.mxu0 %v1430
    %1467 = vmatpush.msra.mxu0 %v1428
    %1468 = vmatpush.msra.mxu0 %v1426
    %1469 = vmatpush.msra.mxu0 %v1424
    %1470 = vmatpush.msra.mxu0 %v1422
    %1471 = vmatpush.msra.mxu0 %v1420
    %1472 = vmatpush.msra.mxu0 %v1418
    %1473 = vmatpush.msra.mxu0 %v1416
    %1474 = vmatpush.msra.mxu0 %v1414
    %1475 = vmatpush.msra.mxu0 %v1412
    %1476 = vmatpush.msra.mxu0 %v1410
    %1477 = vmatpush.msra.mxu0 %v1408
    %1478 = vmatpush.msra.mxu0 %v1406
    %1479 = vmatpush.msra.mxu0 %v1404
    %1480 = vmatmul.f32.gmra.mxu0 %v1437
    %v1481 = vpop.f32.mrf.mxu0
    %v1482 = vadd.f32 %v1441, %v1481
    %1483 = vdwg.mxu0
    %v1484 = vld [vmem:[%s9] sm:$0x1]
    %v1485 = vmul.f32 %v1482, 0.5
    %v1486 = vmul.f32 %v1485, 1.442695
    %v1487 = vpow.pop %v1486
    %v1488 = vmul.f32 %v1484, %v1487
    %v1489 = vadd.f32 %v1462, %v1488
    %v1493 = vrot.slane %v1482, 7
    %v1494 = vrot.slane %v1489, 6
    %v1495 = vsel %vm170, %v1462, %v1493
    %v1496 = vsel %vm172, %v1495, %v1494
    %v1498 = vlaneseq
    %vm1499 = vcmp.ge.s32.totalorder %v1498, 0
    %vm1500 = vcmp.lt.s32.totalorder %v1498, 384
    %vm1501 = vmand %vm1499, %vm1500
    %1502 = vst.msk [vmem:[#allocation13] sm:$0x7] %vm1501, %v1496
    // Predicated region
    $region66: #{tpu_custom_call.1} parent=1 // pred_check
      _
    $region67: #{tpu_custom_call.1} parent=1 // pred_check_branch
      %1504 = sbr.rel (0) target = $region69
    $region68: #{tpu_custom_call.1} parent=1 // pred_region
      %1506 = vsyncadd [#allocation4], 0
      %s1508 = sshll.u32 [#allocation13], 4
      %s1509 = int_to_ptr.vmem [resolvable:$true] %s1508
      %s1510 = sshll.u32 %s10, 4
      %s1511 = int_to_ptr.hbm [resolvable:$true] %s1510
      %1513 = dma.vmem_to_hbm [thread:$0]  %s1509, 48, %s1511, [#allocation4]
    $region69: #{tpu_custom_call.1} parent=1 // pred_fallthru
      _
    // Predicated region
    $region70: #{tpu_custom_call.1} parent=1 // pred_check
      _
    $region71: #{tpu_custom_call.1} parent=1 // pred_check_branch
      %1515 = sbr.rel (0) target = $region73
    $region72: #{tpu_custom_call.1} parent=1 // pred_region
      %1517 = dma.done [#allocation4], 48
    $region73: #{tpu_custom_call.1} parent=1 // pred_fallthru
      _
    %1518 = vsyncpa [#allocation3], 1
    %1519 = vsyncpa [#allocation8], 1
    %1520 = vsyncpa [#allocation11], 1
    %1521 = vsyncpa [#allocation4], 1
    %1522 = vsyncpa [#allocation5], 1

</llo_original>
